<compile_context>
chip_gen: v7x
topology: tpu7x:2x2x1
jax: 0.10.0
libtpu: 0.0.40
codegen_flags: <defaults>
</compile_context>

<pallas_src>
import math
import functools

import jax
import jax.numpy as jnp
from jax.experimental import pallas as pl
from jax.experimental.pallas import tpu as pltpu


def _heads_major(t, seq_len, num_heads, head_dim):
    """(S, H*hd) -> (H, S, hd) head-major, without per-head slicing/concat."""
    t3 = t.reshape(seq_len, num_heads, head_dim)
    if hasattr(pltpu, "einshape"):
        # Lane-layout-aware combined reshape+transpose (preferred on TPU).
        return pltpu.einshape("shd->hsd", t3)
    return jnp.swapaxes(t3, 0, 1)


def _mhsa_kernel(x_ref, wq_ref, wk_ref, wv_ref, bq_ref, bk_ref, bv_ref,
                 wo_ref, bo_ref, o_ref, *, seq_len, num_heads, batch_block):
    """One block of `batch_block` batch elements per grid step.

    x_ref  : (Bb*S, D)   f32  VMEM
    wq/wk/wv_ref : (D, D) bf16 (pre-transposed Linear weights)
    bq/bk/bv_ref : (1, D) f32
    wo_ref : (H, hd, D)  bf16 (out_proj weight grouped per head)
    bo_ref : (1, D)      f32
    o_ref  : (Bb*S, D)   f32  VMEM
    """
    S = seq_len
    H = num_heads
    D = x_ref.shape[-1]
    hd = D // H
    scale = 1.0 / math.sqrt(hd)  # PyTorch: scores / key.shape[-1]**0.5 (= head_dim)

    # ---- q/k/v projections: three (Bb*S, D) x (D, D) bf16 matmuls, f32 acc ----
    xb = x_ref[...].astype(jnp.bfloat16)
    q = jnp.dot(xb, wq_ref[...], preferred_element_type=jnp.float32) + bq_ref[...]
    k = jnp.dot(xb, wk_ref[...], preferred_element_type=jnp.float32) + bk_ref[...]
    v = jnp.dot(xb, wv_ref[...], preferred_element_type=jnp.float32) + bv_ref[...]
    q = q * scale  # fold the attention scale into q once (VPU, (M, D) elems)

    wo = wo_ref[...]   # (H, hd, D) bf16
    bo = bo_ref[...]   # (1, D)     f32

    # ---- attention, heads batched via a leading head axis ----
    for b in range(batch_block):        # short static loop; slices are sublane-aligned
        lo = b * S
        qh = _heads_major(q[lo:lo + S, :], S, H, hd).astype(jnp.bfloat16)
        kh = _heads_major(k[lo:lo + S, :], S, H, hd).astype(jnp.bfloat16)
        vh = _heads_major(v[lo:lo + S, :], S, H, hd).astype(jnp.bfloat16)

        # (H, S, S) scores, f32 accumulation on the MXU.
        s = jnp.einsum("hqd,hkd->hqk", qh, kh,
                       preferred_element_type=jnp.float32)

        # softmax over keys, f32; reciprocal goes to the EUP slot.
        m = jnp.max(s, axis=-1, keepdims=True)
        e = jnp.exp(s - m)
        p = e * pl.reciprocal(jnp.sum(e, axis=-1, keepdims=True), approx=True)

        # (H, S, hd) per-head attention output.
        oh = jnp.einsum("hqk,hkd->hqd", p.astype(jnp.bfloat16), vh,
                        preferred_element_type=jnp.float32)

        # out_proj applied per head and reduced over heads -> no concatenate.
        out_b = jnp.einsum("hqd,hde->hqe", oh.astype(jnp.bfloat16), wo,
                           preferred_element_type=jnp.float32)
        out_b = jnp.sum(out_b, axis=0) + bo            # (S, D)

        o_ref[lo:lo + S, :] = out_b.astype(o_ref.dtype)


def _pick_batch_block(batch, seq_len):
    # Target a few hundred rows per grid step (amortize ~0.35us/step) while
    # keeping the unrolled per-batch attention loop short.
    bb = min(batch, max(1, 256 // seq_len), 8)
    while batch % bb != 0:
        bb -= 1
    return max(bb, 1)


def self_attention_block(x, w_in, b_in, w_out, b_out, num_heads,
                         batch_block=None):
    """Fused MHSA block.

    x     : (B, S, D) f32
    w_in  : (3D, D)   -- nn.Linear(dim, 3*dim).weight (PyTorch layout)
    b_in  : (3D,)
    w_out : (D, D)    -- nn.Linear(dim, dim).weight
    b_out : (D,)
    """
    B, S, D = x.shape
    H = num_heads
    assert D % H == 0
    hd = D // H
    assert S % 8 == 0, "seq_len must be a multiple of 8 (TPU sublane tile)"

    if batch_block is None:
        batch_block = _pick_batch_block(B, S)
    assert B % batch_block == 0
    Bb = batch_block
    M = Bb * S

    # --- parameter prep (free XLA reshapes/casts): pre-split q/k/v, bf16 weights ---
    w_in_t = w_in.T                                        # (D, 3D)
    wq = w_in_t[:, 0 * D:1 * D].astype(jnp.bfloat16)
    wk = w_in_t[:, 1 * D:2 * D].astype(jnp.bfloat16)
    wv = w_in_t[:, 2 * D:3 * D].astype(jnp.bfloat16)
    bq = b_in[0 * D:1 * D].reshape(1, D).astype(jnp.float32)
    bk = b_in[1 * D:2 * D].reshape(1, D).astype(jnp.float32)
    bv = b_in[2 * D:3 * D].reshape(1, D).astype(jnp.float32)
    wo = w_out.T.reshape(H, hd, D).astype(jnp.bfloat16)    # per-head out_proj rows
    bo = b_out.reshape(1, D).astype(jnp.float32)

    x2 = x.reshape(B * S, D)   # flatten (B, S) -> M rows for the projections

    kernel = functools.partial(_mhsa_kernel, seq_len=S, num_heads=H,
                               batch_block=Bb)

    flops = 8 * B * S * D * D + 4 * B * S * S * D
    transcendentals = B * H * S * S
    bytes_accessed = 8 * B * S * D + 8 * D * D + 32 * D

    grid = (B // Bb,)
    # NOTE: weights/biases have constant index maps; on v7x one could add
    # pipeline_mode=pl.Buffered(1) (or load them to scratch) to halve their
    # VMEM footprint, and keep >=2 grid steps so both TensorCores get work.
    out = pl.pallas_call(
        kernel,
        out_shape=jax.ShapeDtypeStruct((B * S, D), x.dtype),
        grid_spec=pltpu.PrefetchScalarGridSpec(
            num_scalar_prefetch=0,
            grid=grid,
            in_specs=[
                pl.BlockSpec((M, D), lambda i: (i, 0)),        # x
                pl.BlockSpec((D, D), lambda i: (0, 0)),        # wq
                pl.BlockSpec((D, D), lambda i: (0, 0)),        # wk
                pl.BlockSpec((D, D), lambda i: (0, 0)),        # wv
                pl.BlockSpec((1, D), lambda i: (0, 0)),        # bq
                pl.BlockSpec((1, D), lambda i: (0, 0)),        # bk
                pl.BlockSpec((1, D), lambda i: (0, 0)),        # bv
                pl.BlockSpec((H, hd, D), lambda i: (0, 0, 0)), # wo (per-head)
                pl.BlockSpec((1, D), lambda i: (0, 0)),        # bo
            ],
            out_specs=pl.BlockSpec((M, D), lambda i: (i, 0)),
        ),
        compiler_params=pltpu.CompilerParams(
            dimension_semantics=("parallel",)),
        cost_estimate=pl.CostEstimate(
            flops=flops, transcendentals=transcendentals,
            bytes_accessed=bytes_accessed),
    )(x2, wq, wk, wv, bq, bk, bv, wo, bo)

    return out.reshape(B, S, D)


def _reference(x, w_in, b_in, w_out, b_out, num_heads):
    """Pure-JAX f32 reference mirroring the PyTorch module exactly."""
    B, S, D = x.shape
    hd = D // num_heads
    qkv = x @ w_in.T + b_in                              # (B, S, 3D)
    q, k, v = jnp.split(qkv, 3, axis=-1)

    def heads(t):
        return t.reshape(B, S, num_heads, hd).transpose(0, 2, 1, 3)

    q, k, v = heads(q), heads(k), heads(v)
    s = jnp.einsum("bhqd,bhkd->bhqk", q, k) / math.sqrt(hd)
    p = jax.nn.softmax(s, axis=-1)
    o = jnp.einsum("bhqk,bhkd->bhqd", p, v)
    o = o.transpose(0, 2, 1, 3).reshape(B, S, D)
    return o @ w_out.T + b_out


if __name__ == "__main__":
    # Small shapes consistent with the module's forward: (batch, seq, dim).
    B, S, D, H = 2, 8, 32, 4

    key = jax.random.PRNGKey(0)
    kx, k1, k2, k3, k4 = jax.random.split(key, 5)

    x = jax.random.normal(kx, (B, S, D), dtype=jnp.float32)

    # Deterministic params in native PyTorch nn.Linear layout.
    bound = 1.0 / math.sqrt(D)
    w_in = jax.random.uniform(k1, (3 * D, D), jnp.float32, -bound, bound)
    b_in = jax.random.uniform(k2, (3 * D,), jnp.float32, -bound, bound)
    w_out = jax.random.uniform(k3, (D, D), jnp.float32, -bound, bound)
    b_out = jax.random.uniform(k4, (D,), jnp.float32, -bound, bound)

    out = self_attention_block(x, w_in, b_in, w_out, b_out, num_heads=H)
    out = jax.block_until_ready(out)

    ref = _reference(x, w_in, b_in, w_out, b_out, H)
    assert out.shape == (B, S, D)
    # bf16 MXU operands (f32 accumulation) + approx reciprocal => looser
    # agreement with the all-f32 reference than the previous pure-f32 kernel.
    max_err = float(jnp.max(jnp.abs(out - ref)))
    assert jnp.allclose(out, ref, rtol=3e-2, atol=3e-2), f"max abs err {max_err}"

    print("KERNEL_OK")
</pallas_src>

<mosaic_0001>
module attributes {stable_mosaic.version = 11 : i64} {
  func.func @_mhsa_kernel(%arg0: i32, %arg1: memref<16x32xf32, #tpu.memory_space<vmem>>, %arg2: memref<32x32xbf16, #tpu.memory_space<vmem>>, %arg3: memref<32x32xbf16, #tpu.memory_space<vmem>>, %arg4: memref<32x32xbf16, #tpu.memory_space<vmem>>, %arg5: memref<1x32xf32, #tpu.memory_space<vmem>>, %arg6: memref<1x32xf32, #tpu.memory_space<vmem>>, %arg7: memref<1x32xf32, #tpu.memory_space<vmem>>, %arg8: memref<4x8x32xbf16, #tpu.memory_space<vmem>>, %arg9: memref<1x32xf32, #tpu.memory_space<vmem>>, %arg10: memref<16x32xf32, #tpu.memory_space<vmem>>) attributes {dimension_semantics = [#tpu.dimension_semantics<parallel>], iteration_bounds = array<i64: 1>, scalar_prefetch = 0 : i64, scratch_operands = 0 : i64, tpu.core_type = #tpu.core_type<tc>, window_params = [{transform_indices = @transform_0, window_bounds = array<i64: 16, 32>}, {pipeline_mode = #tpu.pipeline_mode<synchronous>, transform_indices = @transform_1, window_bounds = array<i64: 32, 32>}, {pipeline_mode = #tpu.pipeline_mode<synchronous>, transform_indices = @transform_2, window_bounds = array<i64: 32, 32>}, {pipeline_mode = #tpu.pipeline_mode<synchronous>, transform_indices = @transform_3, window_bounds = array<i64: 32, 32>}, {pipeline_mode = #tpu.pipeline_mode<synchronous>, transform_indices = @transform_4, window_bounds = array<i64: 1, 32>}, {pipeline_mode = #tpu.pipeline_mode<synchronous>, transform_indices = @transform_5, window_bounds = array<i64: 1, 32>}, {pipeline_mode = #tpu.pipeline_mode<synchronous>, transform_indices = @transform_6, window_bounds = array<i64: 1, 32>}, {pipeline_mode = #tpu.pipeline_mode<synchronous>, transform_indices = @transform_7, window_bounds = array<i64: 4, 8, 32>}, {pipeline_mode = #tpu.pipeline_mode<synchronous>, transform_indices = @transform_8, window_bounds = array<i64: 1, 32>}, {transform_indices = @transform_9, window_bounds = array<i64: 16, 32>}]} {
    %c0 = arith.constant 0 : index
    %c0_0 = arith.constant 0 : index
    %0 = vector.load %arg1[%c0, %c0_0] : memref<16x32xf32, #tpu.memory_space<vmem>>, vector<16x32xf32>
    %1 = arith.truncf %0 : vector<16x32xf32> to vector<16x32xbf16>
    %c0_1 = arith.constant 0 : index
    %c0_2 = arith.constant 0 : index
    %2 = vector.load %arg2[%c0_1, %c0_2] : memref<32x32xbf16, #tpu.memory_space<vmem>>, vector<32x32xbf16>
    %cst = arith.constant dense<0.000000e+00> : vector<16x32xf32>
    %3 = tpu.matmul %1, %2, %cst {dimension_numbers = #tpu.dot_dimension_numbers<[1], [0], [0], [1], [0, 0, 1, 1], [], []>} : vector<16x32xbf16>, vector<32x32xbf16>, vector<16x32xf32> -> vector<16x32xf32>
    %c0_3 = arith.constant 0 : index
    %c0_4 = arith.constant 0 : index
    %4 = vector.load %arg5[%c0_3, %c0_4] : memref<1x32xf32, #tpu.memory_space<vmem>>, vector<1x32xf32>
    %5 = vector.broadcast %4 : vector<1x32xf32> to vector<16x32xf32>
    %6 = arith.addf %3, %5 : vector<16x32xf32>
    %c0_5 = arith.constant 0 : index
    %c0_6 = arith.constant 0 : index
    %7 = vector.load %arg3[%c0_5, %c0_6] : memref<32x32xbf16, #tpu.memory_space<vmem>>, vector<32x32xbf16>
    %cst_7 = arith.constant dense<0.000000e+00> : vector<16x32xf32>
    %8 = tpu.matmul %1, %7, %cst_7 {dimension_numbers = #tpu.dot_dimension_numbers<[1], [0], [0], [1], [0, 0, 1, 1], [], []>} : vector<16x32xbf16>, vector<32x32xbf16>, vector<16x32xf32> -> vector<16x32xf32>
    %c0_8 = arith.constant 0 : index
    %c0_9 = arith.constant 0 : index
    %9 = vector.load %arg6[%c0_8, %c0_9] : memref<1x32xf32, #tpu.memory_space<vmem>>, vector<1x32xf32>
    %10 = vector.broadcast %9 : vector<1x32xf32> to vector<16x32xf32>
    %11 = arith.addf %8, %10 : vector<16x32xf32>
    %c0_10 = arith.constant 0 : index
    %c0_11 = arith.constant 0 : index
    %12 = vector.load %arg4[%c0_10, %c0_11] : memref<32x32xbf16, #tpu.memory_space<vmem>>, vector<32x32xbf16>
    %cst_12 = arith.constant dense<0.000000e+00> : vector<16x32xf32>
    %13 = tpu.matmul %1, %12, %cst_12 {dimension_numbers = #tpu.dot_dimension_numbers<[1], [0], [0], [1], [0, 0, 1, 1], [], []>} : vector<16x32xbf16>, vector<32x32xbf16>, vector<16x32xf32> -> vector<16x32xf32>
    %c0_13 = arith.constant 0 : index
    %c0_14 = arith.constant 0 : index
    %14 = vector.load %arg7[%c0_13, %c0_14] : memref<1x32xf32, #tpu.memory_space<vmem>>, vector<1x32xf32>
    %15 = vector.broadcast %14 : vector<1x32xf32> to vector<16x32xf32>
    %16 = arith.addf %13, %15 : vector<16x32xf32>
    %cst_15 = arith.constant 0.353553385 : f32
    %17 = vector.broadcast %cst_15 : f32 to vector<16x32xf32>
    %18 = arith.mulf %6, %17 : vector<16x32xf32>
    %c0_16 = arith.constant 0 : index
    %c0_17 = arith.constant 0 : index
    %c0_18 = arith.constant 0 : index
    %19 = vector.load %arg8[%c0_16, %c0_17, %c0_18] : memref<4x8x32xbf16, #tpu.memory_space<vmem>>, vector<4x8x32xbf16>
    %c0_19 = arith.constant 0 : index
    %c0_20 = arith.constant 0 : index
    %20 = vector.load %arg9[%c0_19, %c0_20] : memref<1x32xf32, #tpu.memory_space<vmem>>, vector<1x32xf32>
    %21 = vector.extract_strided_slice %18 {offsets = [0, 0], sizes = [8, 32], strides = [1, 1]} : vector<16x32xf32> to vector<8x32xf32>
    %22 = vector.shape_cast %21 : vector<8x32xf32> to vector<8x4x8xf32>
    %23 = tpu.transpose %22, [1, 0, 2] : vector<8x4x8xf32> -> vector<4x8x8xf32>
    %24 = arith.truncf %23 : vector<4x8x8xf32> to vector<4x8x8xbf16>
    %25 = vector.extract_strided_slice %11 {offsets = [0, 0], sizes = [8, 32], strides = [1, 1]} : vector<16x32xf32> to vector<8x32xf32>
    %26 = vector.shape_cast %25 : vector<8x32xf32> to vector<8x4x8xf32>
    %27 = tpu.transpose %26, [1, 0, 2] : vector<8x4x8xf32> -> vector<4x8x8xf32>
    %28 = arith.truncf %27 : vector<4x8x8xf32> to vector<4x8x8xbf16>
    %29 = vector.extract_strided_slice %16 {offsets = [0, 0], sizes = [8, 32], strides = [1, 1]} : vector<16x32xf32> to vector<8x32xf32>
    %30 = vector.shape_cast %29 : vector<8x32xf32> to vector<8x4x8xf32>
    %31 = tpu.transpose %30, [1, 0, 2] : vector<8x4x8xf32> -> vector<4x8x8xf32>
    %32 = arith.truncf %31 : vector<4x8x8xf32> to vector<4x8x8xbf16>
    "tpu.trace_start"() <{level = 10 : i32, message = "hqd,hkd->hqk"}> : () -> ()
    %cst_21 = arith.constant dense<0.000000e+00> : vector<4x8x8xf32>
    %33 = tpu.matmul %24, %28, %cst_21 {dimension_numbers = #tpu.dot_dimension_numbers<[2], [2], [1], [1], [0, 0, 0, 1, 1, 1], [0], [0]>} : vector<4x8x8xbf16>, vector<4x8x8xbf16>, vector<4x8x8xf32> -> vector<4x8x8xf32>
    "tpu.trace_stop"() : () -> ()
    %cst_22 = arith.constant dense<0xFF800000> : vector<4x8xf32>
    %34 = vector.multi_reduction <maximumf>, %33, %cst_22 [2] : vector<4x8x8xf32> to vector<4x8xf32>
    %35 = vector.shape_cast %34 : vector<4x8xf32> to vector<4x8x1xf32>
    %36 = vector.broadcast %35 : vector<4x8x1xf32> to vector<4x8x8xf32>
    %37 = arith.subf %33, %36 : vector<4x8x8xf32>
    %38 = math.exp %37 : vector<4x8x8xf32>
    %cst_23 = arith.constant dense<0.000000e+00> : vector<4x8xf32>
    %39 = vector.multi_reduction <add>, %38, %cst_23 [2] : vector<4x8x8xf32> to vector<4x8xf32>
    %40 = vector.shape_cast %39 : vector<4x8xf32> to vector<4x8x1xf32>
    %41 = tpu.reciprocal %40 {approx = true} : vector<4x8x1xf32> -> vector<4x8x1xf32>
    %42 = vector.broadcast %41 : vector<4x8x1xf32> to vector<4x8x8xf32>
    %43 = arith.mulf %38, %42 : vector<4x8x8xf32>
    %44 = arith.truncf %43 : vector<4x8x8xf32> to vector<4x8x8xbf16>
    "tpu.trace_start"() <{level = 10 : i32, message = "hqk,hkd->hqd"}> : () -> ()
    %cst_24 = arith.constant dense<0.000000e+00> : vector<4x8x8xf32>
    %45 = tpu.matmul %44, %32, %cst_24 {dimension_numbers = #tpu.dot_dimension_numbers<[2], [1], [1], [2], [0, 0, 0, 1, 1, 2], [0], [0]>} : vector<4x8x8xbf16>, vector<4x8x8xbf16>, vector<4x8x8xf32> -> vector<4x8x8xf32>
    "tpu.trace_stop"() : () -> ()
    %46 = arith.truncf %45 : vector<4x8x8xf32> to vector<4x8x8xbf16>
    "tpu.trace_start"() <{level = 10 : i32, message = "hqd,hde->hqe"}> : () -> ()
    %cst_25 = arith.constant dense<0.000000e+00> : vector<4x8x32xf32>
    %47 = tpu.matmul %46, %19, %cst_25 {dimension_numbers = #tpu.dot_dimension_numbers<[2], [1], [1], [2], [0, 0, 0, 1, 1, 2], [0], [0]>} : vector<4x8x8xbf16>, vector<4x8x32xbf16>, vector<4x8x32xf32> -> vector<4x8x32xf32>
    "tpu.trace_stop"() : () -> ()
    %cst_26 = arith.constant dense<0.000000e+00> : vector<8x32xf32>
    %48 = vector.multi_reduction <add>, %47, %cst_26 [0] : vector<4x8x32xf32> to vector<8x32xf32>
    %49 = vector.broadcast %20 : vector<1x32xf32> to vector<8x32xf32>
    %50 = arith.addf %48, %49 : vector<8x32xf32>
    %c0_27 = arith.constant 0 : index
    %c0_28 = arith.constant 0 : index
    %51 = vector.load %arg10[%c0_27, %c0_28] : memref<16x32xf32, #tpu.memory_space<vmem>>, vector<8x32xf32>
    tpu.vector_store %arg10[%c0_27, %c0_28], %50 {strides = array<i32>} : memref<16x32xf32, #tpu.memory_space<vmem>>, vector<8x32xf32>,
    %52 = vector.extract_strided_slice %18 {offsets = [8, 0], sizes = [8, 32], strides = [1, 1]} : vector<16x32xf32> to vector<8x32xf32>
    %53 = vector.shape_cast %52 : vector<8x32xf32> to vector<8x4x8xf32>
    %54 = tpu.transpose %53, [1, 0, 2] : vector<8x4x8xf32> -> vector<4x8x8xf32>
    %55 = arith.truncf %54 : vector<4x8x8xf32> to vector<4x8x8xbf16>
    %56 = vector.extract_strided_slice %11 {offsets = [8, 0], sizes = [8, 32], strides = [1, 1]} : vector<16x32xf32> to vector<8x32xf32>
    %57 = vector.shape_cast %56 : vector<8x32xf32> to vector<8x4x8xf32>
    %58 = tpu.transpose %57, [1, 0, 2] : vector<8x4x8xf32> -> vector<4x8x8xf32>
    %59 = arith.truncf %58 : vector<4x8x8xf32> to vector<4x8x8xbf16>
    %60 = vector.extract_strided_slice %16 {offsets = [8, 0], sizes = [8, 32], strides = [1, 1]} : vector<16x32xf32> to vector<8x32xf32>
    %61 = vector.shape_cast %60 : vector<8x32xf32> to vector<8x4x8xf32>
    %62 = tpu.transpose %61, [1, 0, 2] : vector<8x4x8xf32> -> vector<4x8x8xf32>
    %63 = arith.truncf %62 : vector<4x8x8xf32> to vector<4x8x8xbf16>
    "tpu.trace_start"() <{level = 10 : i32, message = "hqd,hkd->hqk"}> : () -> ()
    %cst_29 = arith.constant dense<0.000000e+00> : vector<4x8x8xf32>
    %64 = tpu.matmul %55, %59, %cst_29 {dimension_numbers = #tpu.dot_dimension_numbers<[2], [2], [1], [1], [0, 0, 0, 1, 1, 1], [0], [0]>} : vector<4x8x8xbf16>, vector<4x8x8xbf16>, vector<4x8x8xf32> -> vector<4x8x8xf32>
    "tpu.trace_stop"() : () -> ()
    %cst_30 = arith.constant dense<0xFF800000> : vector<4x8xf32>
    %65 = vector.multi_reduction <maximumf>, %64, %cst_30 [2] : vector<4x8x8xf32> to vector<4x8xf32>
    %66 = vector.shape_cast %65 : vector<4x8xf32> to vector<4x8x1xf32>
    %67 = vector.broadcast %66 : vector<4x8x1xf32> to vector<4x8x8xf32>
    %68 = arith.subf %64, %67 : vector<4x8x8xf32>
    %69 = math.exp %68 : vector<4x8x8xf32>
    %cst_31 = arith.constant dense<0.000000e+00> : vector<4x8xf32>
    %70 = vector.multi_reduction <add>, %69, %cst_31 [2] : vector<4x8x8xf32> to vector<4x8xf32>
    %71 = vector.shape_cast %70 : vector<4x8xf32> to vector<4x8x1xf32>
    %72 = tpu.reciprocal %71 {approx = true} : vector<4x8x1xf32> -> vector<4x8x1xf32>
    %73 = vector.broadcast %72 : vector<4x8x1xf32> to vector<4x8x8xf32>
    %74 = arith.mulf %69, %73 : vector<4x8x8xf32>
    %75 = arith.truncf %74 : vector<4x8x8xf32> to vector<4x8x8xbf16>
    "tpu.trace_start"() <{level = 10 : i32, message = "hqk,hkd->hqd"}> : () -> ()
    %cst_32 = arith.constant dense<0.000000e+00> : vector<4x8x8xf32>
    %76 = tpu.matmul %75, %63, %cst_32 {dimension_numbers = #tpu.dot_dimension_numbers<[2], [1], [1], [2], [0, 0, 0, 1, 1, 2], [0], [0]>} : vector<4x8x8xbf16>, vector<4x8x8xbf16>, vector<4x8x8xf32> -> vector<4x8x8xf32>
    "tpu.trace_stop"() : () -> ()
    %77 = arith.truncf %76 : vector<4x8x8xf32> to vector<4x8x8xbf16>
    "tpu.trace_start"() <{level = 10 : i32, message = "hqd,hde->hqe"}> : () -> ()
    %cst_33 = arith.constant dense<0.000000e+00> : vector<4x8x32xf32>
    %78 = tpu.matmul %77, %19, %cst_33 {dimension_numbers = #tpu.dot_dimension_numbers<[2], [1], [1], [2], [0, 0, 0, 1, 1, 2], [0], [0]>} : vector<4x8x8xbf16>, vector<4x8x32xbf16>, vector<4x8x32xf32> -> vector<4x8x32xf32>
    "tpu.trace_stop"() : () -> ()
    %cst_34 = arith.constant dense<0.000000e+00> : vector<8x32xf32>
    %79 = vector.multi_reduction <add>, %78, %cst_34 [0] : vector<4x8x32xf32> to vector<8x32xf32>
    %80 = vector.broadcast %20 : vector<1x32xf32> to vector<8x32xf32>
    %81 = arith.addf %79, %80 : vector<8x32xf32>
    %c8 = arith.constant 8 : index
    %c0_35 = arith.constant 0 : index
    %82 = vector.load %arg10[%c8, %c0_35] : memref<16x32xf32, #tpu.memory_space<vmem>>, vector<8x32xf32>
    tpu.vector_store %arg10[%c8, %c0_35], %81 {strides = array<i32>} : memref<16x32xf32, #tpu.memory_space<vmem>>, vector<8x32xf32>,
    return
  }
  func.func @transform_0(%arg0: i32) -> (i32, i32) {
    %c0_i32 = arith.constant 0 : i32
    %c0_i32_0 = arith.constant 0 : i32
    return %arg0, %c0_i32 : i32, i32
  }
  func.func @transform_1(%arg0: i32) -> (i32, i32) {
    %c0_i32 = arith.constant 0 : i32
    %c0_i32_0 = arith.constant 0 : i32
    %c0_i32_1 = arith.constant 0 : i32
    return %c0_i32, %c0_i32_0 : i32, i32
  }
  func.func @transform_2(%arg0: i32) -> (i32, i32) {
    %c0_i32 = arith.constant 0 : i32
    %c0_i32_0 = arith.constant 0 : i32
    %c0_i32_1 = arith.constant 0 : i32
    return %c0_i32, %c0_i32_0 : i32, i32
  }
  func.func @transform_3(%arg0: i32) -> (i32, i32) {
    %c0_i32 = arith.constant 0 : i32
    %c0_i32_0 = arith.constant 0 : i32
    %c0_i32_1 = arith.constant 0 : i32
    return %c0_i32, %c0_i32_0 : i32, i32
  }
  func.func @transform_4(%arg0: i32) -> (i32, i32) {
    %c0_i32 = arith.constant 0 : i32
    %c0_i32_0 = arith.constant 0 : i32
    %c0_i32_1 = arith.constant 0 : i32
    return %c0_i32, %c0_i32_0 : i32, i32
  }
  func.func @transform_5(%arg0: i32) -> (i32, i32) {
    %c0_i32 = arith.constant 0 : i32
    %c0_i32_0 = arith.constant 0 : i32
    %c0_i32_1 = arith.constant 0 : i32
    return %c0_i32, %c0_i32_0 : i32, i32
  }
  func.func @transform_6(%arg0: i32) -> (i32, i32) {
    %c0_i32 = arith.constant 0 : i32
    %c0_i32_0 = arith.constant 0 : i32
    %c0_i32_1 = arith.constant 0 : i32
    return %c0_i32, %c0_i32_0 : i32, i32
  }
  func.func @transform_7(%arg0: i32) -> (i32, i32, i32) {
    %c0_i32 = arith.constant 0 : i32
    %c0_i32_0 = arith.constant 0 : i32
    %c0_i32_1 = arith.constant 0 : i32
    %c0_i32_2 = arith.constant 0 : i32
    return %c0_i32, %c0_i32_0, %c0_i32_1 : i32, i32, i32
  }
  func.func @transform_8(%arg0: i32) -> (i32, i32) {
    %c0_i32 = arith.constant 0 : i32
    %c0_i32_0 = arith.constant 0 : i32
    %c0_i32_1 = arith.constant 0 : i32
    return %c0_i32, %c0_i32_0 : i32, i32
  }
  func.func @transform_9(%arg0: i32) -> (i32, i32) {
    %c0_i32 = arith.constant 0 : i32
    %c0_i32_0 = arith.constant 0 : i32
    return %arg0, %c0_i32 : i32, i32
  }
}

</mosaic_0001>

<llo_original>
// kernel: tpu_custom_call.1
$region0: #{tpu_custom_call.1}
  #allocation0 [shape = 'u32[]', space=smem, size = 0x4, offset = 0x4, fixed_abs, tag = 'smem constant byte address 0x4 - core index']
  #allocation1 [shape = 'u32[144,128]{1,0:T(1,128)}', space=vmem, size = 0x12000, scoped, tag = 'internal scratch']
  %s0 = inlined_call_operand.hbm [shape: f32[16,32], index: 0, kind: input, shape index: {}]
  %s1 = inlined_call_operand.hbm [shape: bf16[32,32], index: 1, kind: input, shape index: {}]
  %s2 = inlined_call_operand.hbm [shape: bf16[32,32], index: 2, kind: input, shape index: {}]
  %s3 = inlined_call_operand.hbm [shape: bf16[32,32], index: 3, kind: input, shape index: {}]
  %s4 = inlined_call_operand.vmem [shape: f32[1,32], index: 4, kind: input, shape index: {}]
  %s5 = inlined_call_operand.vmem [shape: f32[1,32], index: 5, kind: input, shape index: {}]
  %s6 = inlined_call_operand.vmem [shape: f32[1,32], index: 6, kind: input, shape index: {}]
  %s7 = inlined_call_operand.vmem [shape: bf16[4,8,32], index: 7, kind: input, shape index: {}]
  %s8 = inlined_call_operand.vmem [shape: f32[1,32], index: 8, kind: input, shape index: {}]
  %s9 = inlined_call_operand.hbm [shape: f32[16,32], index: 9, kind: output, shape index: {}]
  %s10 = sld [smem:[#allocation0]]
  $region62: #{tpu_custom_call.1} parent=0
    _
  %s12 = ssub.s32 1, %s10
  %s13 = scalar_select 0, %s12, %s10
  $region1: #{tpu_custom_call.1} parent=0
    #allocation2 [shape = 'u8[8192]{0}', space=vmem, size = 0x2000, scoped, tag = 'input window, operand 0, single buffered']
    #allocation3 [shape = 's32[1]{0}', space=sflag, size = 0x4, scoped, tag = 'scoped memory for tpu_custom_call.1']
    #allocation4 [shape = 's32[1]{0}', space=sflag, size = 0x4, scoped, tag = 'scoped memory for tpu_custom_call.1']
    #allocation5 [shape = 'u8[8192]{0}', space=vmem, size = 0x2000, scoped, tag = 'input window, operand 1, single buffered']
    #allocation6 [shape = 's32[1]{0}', space=sflag, size = 0x4, scoped, tag = 'scoped memory for tpu_custom_call.1']
    #allocation7 [shape = 'u8[8192]{0}', space=vmem, size = 0x2000, scoped, tag = 'input window, operand 2, single buffered']
    #allocation8 [shape = 'u8[8192]{0}', space=vmem, size = 0x2000, scoped, tag = 'input window, operand 3, single buffered']
    #allocation9 [shape = 's32[1]{0}', space=sflag, size = 0x4, scoped, tag = 'scoped memory for tpu_custom_call.1']
    #allocation10 [shape = 'u8[8192]{0}', space=vmem, size = 0x2000, scoped, tag = 'output window, operand 0, single buffered']
    %14 = vsyncpa [#allocation3], 0
    %15 = vsyncpa [#allocation6], 0
    %16 = vsyncpa [#allocation9], 0
    %17 = vsyncpa [#allocation4], 0
    // Predicated region
    $region2: #{tpu_custom_call.1} parent=1 // pred_check
      _
    $region3: #{tpu_custom_call.1} parent=1 // pred_check_branch
      %19 = sbr.rel (0) target = $region5
    $region4: #{tpu_custom_call.1} parent=1 // pred_region
      %s21 = ssub.s32 256, 256
      %22 = vsyncadd [#allocation3], %s21
      %s23 = sshll.u32 [#allocation2], 4
      %s24 = int_to_ptr.vmem [resolvable:$true] %s23
      %29 = dma.hbm_to_vmem [thread:$0]  %s0, 256, %s24, [#allocation3], 128, 128, 8
    $region5: #{tpu_custom_call.1} parent=1 // pred_fallthru
      _
    // Predicated region
    $region6: #{tpu_custom_call.1} parent=1 // pred_check
      _
    $region7: #{tpu_custom_call.1} parent=1 // pred_check_branch
      %31 = sbr.rel (0) target = $region9
    $region8: #{tpu_custom_call.1} parent=1 // pred_region
      %s33 = ssub.s32 256, 256
      %34 = vsyncadd [#allocation6], %s33
      %s35 = sshll.u32 [#allocation5], 4
      %s36 = int_to_ptr.vmem [resolvable:$true] %s35
      %41 = dma.hbm_to_vmem [thread:$0]  %s1, 256, %s36, [#allocation6], 64, 64, 4
    $region9: #{tpu_custom_call.1} parent=1 // pred_fallthru
      _
    // Predicated region
    $region10: #{tpu_custom_call.1} parent=1 // pred_check
      _
    $region11: #{tpu_custom_call.1} parent=1 // pred_check_branch
      %43 = sbr.rel (0) target = $region13
    $region12: #{tpu_custom_call.1} parent=1 // pred_region
      %s45 = ssub.s32 256, 256
      %46 = vsyncadd [#allocation6], %s45
      %s47 = sshll.u32 [#allocation7], 4
      %s48 = int_to_ptr.vmem [resolvable:$true] %s47
      %53 = dma.hbm_to_vmem [thread:$0]  %s2, 256, %s48, [#allocation6], 64, 64, 4
    $region13: #{tpu_custom_call.1} parent=1 // pred_fallthru
      _
    // Predicated region
    $region14: #{tpu_custom_call.1} parent=1 // pred_check
      _
    $region15: #{tpu_custom_call.1} parent=1 // pred_check_branch
      %55 = sbr.rel (0) target = $region17
    $region16: #{tpu_custom_call.1} parent=1 // pred_region
      %s57 = ssub.s32 256, 256
      %58 = vsyncadd [#allocation9], %s57
      %s59 = sshll.u32 [#allocation8], 4
      %s60 = int_to_ptr.vmem [resolvable:$true] %s59
      %65 = dma.hbm_to_vmem [thread:$0]  %s3, 256, %s60, [#allocation9], 64, 64, 4
    $region17: #{tpu_custom_call.1} parent=1 // pred_fallthru
      _
    // Predicated region
    $region18: #{tpu_custom_call.1} parent=1 // pred_check
      _
    $region19: #{tpu_custom_call.1} parent=1 // pred_check_branch
      %67 = sbr.rel (0) target = $region21
    $region20: #{tpu_custom_call.1} parent=1 // pred_region
      _
    $region21: #{tpu_custom_call.1} parent=1 // pred_fallthru
      _
    // Predicated region
    $region22: #{tpu_custom_call.1} parent=1 // pred_check
      _
    $region23: #{tpu_custom_call.1} parent=1 // pred_check_branch
      %69 = sbr.rel (0) target = $region25
    $region24: #{tpu_custom_call.1} parent=1 // pred_region
      _
    $region25: #{tpu_custom_call.1} parent=1 // pred_fallthru
      _
    // Predicated region
    $region26: #{tpu_custom_call.1} parent=1 // pred_check
      _
    $region27: #{tpu_custom_call.1} parent=1 // pred_check_branch
      %71 = sbr.rel (0) target = $region29
    $region28: #{tpu_custom_call.1} parent=1 // pred_region
      _
    $region29: #{tpu_custom_call.1} parent=1 // pred_fallthru
      _
    // Predicated region
    $region30: #{tpu_custom_call.1} parent=1 // pred_check
      _
    $region31: #{tpu_custom_call.1} parent=1 // pred_check_branch
      %73 = sbr.rel (0) target = $region33
    $region32: #{tpu_custom_call.1} parent=1 // pred_region
      _
    $region33: #{tpu_custom_call.1} parent=1 // pred_fallthru
      _
    // Predicated region
    $region34: #{tpu_custom_call.1} parent=1 // pred_check
      _
    $region35: #{tpu_custom_call.1} parent=1 // pred_check_branch
      %75 = sbr.rel (0) target = $region37
    $region36: #{tpu_custom_call.1} parent=1 // pred_region
      _
    $region37: #{tpu_custom_call.1} parent=1 // pred_fallthru
      _
    // Predicated region
    $region38: #{tpu_custom_call.1} parent=1 // pred_check
      _
    $region39: #{tpu_custom_call.1} parent=1 // pred_check_branch
      %77 = sbr.rel (0) target = $region41
    $region40: #{tpu_custom_call.1} parent=1 // pred_region
      %78 = dma.done [#allocation3], 256
    $region41: #{tpu_custom_call.1} parent=1 // pred_fallthru
      _
    // Predicated region
    $region42: #{tpu_custom_call.1} parent=1 // pred_check
      _
    $region43: #{tpu_custom_call.1} parent=1 // pred_check_branch
      %80 = sbr.rel (0) target = $region45
    $region44: #{tpu_custom_call.1} parent=1 // pred_region
      %81 = dma.done [#allocation6], 256
    $region45: #{tpu_custom_call.1} parent=1 // pred_fallthru
      _
    // Predicated region
    $region46: #{tpu_custom_call.1} parent=1 // pred_check
      _
    $region47: #{tpu_custom_call.1} parent=1 // pred_check_branch
      %83 = sbr.rel (0) target = $region49
    $region48: #{tpu_custom_call.1} parent=1 // pred_region
      %84 = dma.done [#allocation6], 256
    $region49: #{tpu_custom_call.1} parent=1 // pred_fallthru
      _
    // Predicated region
    $region50: #{tpu_custom_call.1} parent=1 // pred_check
      _
    $region51: #{tpu_custom_call.1} parent=1 // pred_check_branch
      %86 = sbr.rel (0) target = $region53
    $region52: #{tpu_custom_call.1} parent=1 // pred_region
      %87 = dma.done [#allocation9], 256
    $region53: #{tpu_custom_call.1} parent=1 // pred_fallthru
      _
    %v89 = vld [vmem:[#allocation2] sm:$0xff]
    %v90 = vld [vmem:[#allocation2 + $0x8] sm:$0xff]
    %v91 = vpack.c.bf16 %v90, %v89
    %v92 = vld [vmem:[#allocation5] sm:$0xf]
    %v93 = vld [vmem:[#allocation5 + $0x4] sm:$0xf]
    %v94 = vld [vmem:[#allocation5 + $0x8] sm:$0xf]
    %v95 = vld [vmem:[#allocation5 + $0xc] sm:$0xf]
    %v96 = vld [vmem:[%s4] sm:$0x1]
    %v98 = vlaneseq
    %v99 = vshrl.u32 %v98, 7
    %v100 = vsub.s32 0, %v99
    %v101 = vrot.slane %v96, %v100
    %v107 = vunpack.c.l.b16 %v92
    %v108 = vunpack.c.l.b16 %v93
    %v109 = vunpack.c.l.b16 %v94
    %v110 = vunpack.c.l.b16 %v95
    %v111 = vpack.c.b16 %v108, %v107
    %v112 = vpack.c.b16 %v110, %v109
    %vm115 = vcmask 261120
    %v117 = vsel %vm115, %v91, 0
    %119 = vmatprep.subr.bf16.mxu0 0
    %120 = vmatpush1.bf16.msra.mxu0 %v111
    %121 = vmatprep.subr.bf16.mxu0 0
    %122 = vmatpush1.bf16.msra.mxu0 %v112
    %123 = vmatprep.subr.bf16.mxu0 0
    %124 = vmatpush1.bf16.msra.mxu0 0
    %125 = vmatprep.subr.bf16.mxu0 0
    %126 = vmatpush1.bf16.msra.mxu0 0
    %127 = vmatprep.subr.bf16.mxu0 0
    %128 = vmatpush1.bf16.msra.mxu0 0
    %129 = vmatprep.subr.bf16.mxu0 0
    %130 = vmatpush1.bf16.msra.mxu0 0
    %131 = vmatprep.subr.bf16.mxu0 0
    %132 = vmatpush1.bf16.msra.mxu0 0
    %133 = vmatprep.subr.bf16.mxu0 0
    %134 = vmatpush1.bf16.msra.mxu0 0
    %135 = vmatprep.subr.bf16.mxu0 0
    %136 = vmatpush1.bf16.msra.mxu0 0
    %137 = vmatprep.subr.bf16.mxu0 0
    %138 = vmatpush1.bf16.msra.mxu0 0
    %139 = vmatprep.subr.bf16.mxu0 0
    %140 = vmatpush1.bf16.msra.mxu0 0
    %141 = vmatprep.subr.bf16.mxu0 0
    %142 = vmatpush1.bf16.msra.mxu0 0
    %143 = vmatprep.subr.bf16.mxu0 0
    %144 = vmatpush1.bf16.msra.mxu0 0
    %145 = vmatprep.subr.bf16.mxu0 0
    %146 = vmatpush1.bf16.msra.mxu0 0
    %147 = vmatprep.subr.bf16.mxu0 0
    %148 = vmatpush1.bf16.msra.mxu0 0
    %149 = vmatprep.subr.bf16.mxu0 0
    %150 = vmatpush1.bf16.msra.mxu0 0
    %151 = vmatprep.mubr.bf16.mxu0 0
    %152 = vmatmul.mubr.bf16.gmra.mrb[0].mxu0 %v117
    %v153 = vpop.f32.mrb[0].mxu0
    %v154 = vadd.f32 %v101, %v153
    %v155 = vpop.f32.mrb[0].mxu0
    %v156 = vpop.f32.mrb[0].mxu0
    %v157 = vadd.f32 %v101, %v156
    %v158 = vpop.f32.mrb[0].mxu0
    %159 = vdwg.mxu0
    %v160 = vld [vmem:[#allocation7] sm:$0xf]
    %v161 = vld [vmem:[#allocation7 + $0x4] sm:$0xf]
    %v162 = vld [vmem:[#allocation7 + $0x8] sm:$0xf]
    %v163 = vld [vmem:[#allocation7 + $0xc] sm:$0xf]
    %v164 = vld [vmem:[%s5] sm:$0x1]
    %v166 = vlaneseq
    %v167 = vshrl.u32 %v166, 7
    %v168 = vsub.s32 0, %v167
    %v169 = vrot.slane %v164, %v168
    %v175 = vunpack.c.l.b16 %v160
    %v176 = vunpack.c.l.b16 %v161
    %v177 = vunpack.c.l.b16 %v162
    %v178 = vunpack.c.l.b16 %v163
    %v179 = vpack.c.b16 %v176, %v175
    %v180 = vpack.c.b16 %v178, %v177
    %183 = vmatprep.subr.bf16.mxu0 0
    %184 = vmatpush1.bf16.msra.mxu0 %v179
    %185 = vmatprep.subr.bf16.mxu0 0
    %186 = vmatpush1.bf16.msra.mxu0 %v180
    %187 = vmatprep.subr.bf16.mxu0 0
    %188 = vmatpush1.bf16.msra.mxu0 0
    %189 = vmatprep.subr.bf16.mxu0 0
    %190 = vmatpush1.bf16.msra.mxu0 0
    %191 = vmatprep.subr.bf16.mxu0 0
    %192 = vmatpush1.bf16.msra.mxu0 0
    %193 = vmatprep.subr.bf16.mxu0 0
    %194 = vmatpush1.bf16.msra.mxu0 0
    %195 = vmatprep.subr.bf16.mxu0 0
    %196 = vmatpush1.bf16.msra.mxu0 0
    %197 = vmatprep.subr.bf16.mxu0 0
    %198 = vmatpush1.bf16.msra.mxu0 0
    %199 = vmatprep.subr.bf16.mxu0 0
    %200 = vmatpush1.bf16.msra.mxu0 0
    %201 = vmatprep.subr.bf16.mxu0 0
    %202 = vmatpush1.bf16.msra.mxu0 0
    %203 = vmatprep.subr.bf16.mxu0 0
    %204 = vmatpush1.bf16.msra.mxu0 0
    %205 = vmatprep.subr.bf16.mxu0 0
    %206 = vmatpush1.bf16.msra.mxu0 0
    %207 = vmatprep.subr.bf16.mxu0 0
    %208 = vmatpush1.bf16.msra.mxu0 0
    %209 = vmatprep.subr.bf16.mxu0 0
    %210 = vmatpush1.bf16.msra.mxu0 0
    %211 = vmatprep.subr.bf16.mxu0 0
    %212 = vmatpush1.bf16.msra.mxu0 0
    %213 = vmatprep.subr.bf16.mxu0 0
    %214 = vmatpush1.bf16.msra.mxu0 0
    %215 = vmatprep.mubr.bf16.mxu0 0
    %216 = vmatmul.mubr.bf16.gmra.mrb[0].mxu0 %v117
    %v217 = vpop.f32.mrb[0].mxu0
    %v218 = vadd.f32 %v169, %v217
    %v219 = vpop.f32.mrb[0].mxu0
    %v220 = vpop.f32.mrb[0].mxu0
    %v221 = vadd.f32 %v169, %v220
    %v222 = vpop.f32.mrb[0].mxu0
    %223 = vdwg.mxu0
    %v224 = vld [vmem:[#allocation8] sm:$0xf]
    %v225 = vld [vmem:[#allocation8 + $0x4] sm:$0xf]
    %v226 = vld [vmem:[#allocation8 + $0x8] sm:$0xf]
    %v227 = vld [vmem:[#allocation8 + $0xc] sm:$0xf]
    %v228 = vld [vmem:[%s6] sm:$0x1]
    %v230 = vlaneseq
    %v231 = vshrl.u32 %v230, 7
    %v232 = vsub.s32 0, %v231
    %v233 = vrot.slane %v228, %v232
    %v239 = vunpack.c.l.b16 %v224
    %v240 = vunpack.c.l.b16 %v225
    %v241 = vunpack.c.l.b16 %v226
    %v242 = vunpack.c.l.b16 %v227
    %v243 = vpack.c.b16 %v240, %v239
    %v244 = vpack.c.b16 %v242, %v241
    %247 = vmatprep.subr.bf16.mxu0 0
    %248 = vmatpush1.bf16.msra.mxu0 %v243
    %249 = vmatprep.subr.bf16.mxu0 0
    %250 = vmatpush1.bf16.msra.mxu0 %v244
    %251 = vmatprep.subr.bf16.mxu0 0
    %252 = vmatpush1.bf16.msra.mxu0 0
    %253 = vmatprep.subr.bf16.mxu0 0
    %254 = vmatpush1.bf16.msra.mxu0 0
    %255 = vmatprep.subr.bf16.mxu0 0
    %256 = vmatpush1.bf16.msra.mxu0 0
    %257 = vmatprep.subr.bf16.mxu0 0
    %258 = vmatpush1.bf16.msra.mxu0 0
    %259 = vmatprep.subr.bf16.mxu0 0
    %260 = vmatpush1.bf16.msra.mxu0 0
    %261 = vmatprep.subr.bf16.mxu0 0
    %262 = vmatpush1.bf16.msra.mxu0 0
    %263 = vmatprep.subr.bf16.mxu0 0
    %264 = vmatpush1.bf16.msra.mxu0 0
    %265 = vmatprep.subr.bf16.mxu0 0
    %266 = vmatpush1.bf16.msra.mxu0 0
    %267 = vmatprep.subr.bf16.mxu0 0
    %268 = vmatpush1.bf16.msra.mxu0 0
    %269 = vmatprep.subr.bf16.mxu0 0
    %270 = vmatpush1.bf16.msra.mxu0 0
    %271 = vmatprep.subr.bf16.mxu0 0
    %272 = vmatpush1.bf16.msra.mxu0 0
    %273 = vmatprep.subr.bf16.mxu0 0
    %274 = vmatpush1.bf16.msra.mxu0 0
    %275 = vmatprep.subr.bf16.mxu0 0
    %276 = vmatpush1.bf16.msra.mxu0 0
    %277 = vmatprep.subr.bf16.mxu0 0
    %278 = vmatpush1.bf16.msra.mxu0 0
    %279 = vmatprep.mubr.bf16.mxu0 0
    %280 = vmatmul.mubr.bf16.gmra.mrb[0].mxu0 %v117
    %v281 = vpop.f32.mrb[0].mxu0
    %v282 = vadd.f32 %v233, %v281
    %v283 = vpop.f32.mrb[0].mxu0
    %v284 = vpop.f32.mrb[0].mxu0
    %v285 = vadd.f32 %v233, %v284
    %v286 = vpop.f32.mrb[0].mxu0
    %287 = vdwg.mxu0
    %v288 = vmul.f32 %v154, 0.35355338
    %v289 = vmul.f32 %v157, 0.35355338
    %v290 = vld [vmem:[%s7] sm:$0xf]
    %v291 = vld [vmem:[%s7 + $0x4] sm:$0xf]
    %v292 = vld [vmem:[%s7 + $0x8] sm:$0xf]
    %v293 = vld [vmem:[%s7 + $0xc] sm:$0xf]
    %v294 = vld [vmem:[%s8] sm:$0x1]
    %296 = vrot.lane.b32.xlu0 %v288, 120
    %v297 = vpop.permute.xlu0 %296
    %299 = vrot.lane.b32.xlu0 %v288, 112
    %v300 = vpop.permute.xlu0 %299
    %302 = vrot.lane.b32.xlu0 %v288, 104
    %v303 = vpop.permute.xlu0 %302
    %v305 = vcombine.low %v288, %v300
    %v306 = vcombine.high %v288, %v300
    %v308 = vunpack.c.l.s4 1983009808
    %v309 = vunpack.c.0.s8 %v308
    %v310 = vlaneseq
    %v311 = vshrl.u32 %v310, 7
    %v312 = vsub.s32 %v309, %v311
    %v313 = vrot.slane %v305, %v312
    %v315 = vunpack.c.l.s4 1983009808
    %v316 = vunpack.c.0.s8 %v315
    %v317 = vlaneseq
    %v318 = vshrl.u32 %v317, 7
    %v319 = vsub.s32 %v316, %v318
    %v320 = vrot.slane %v306, %v319
    %v321 = vcombine.low %v297, %v303
    %v322 = vcombine.high %v297, %v303
    %v324 = vunpack.c.l.s4 1983009808
    %v325 = vunpack.c.0.s8 %v324
    %v326 = vlaneseq
    %v327 = vshrl.u32 %v326, 7
    %v328 = vsub.s32 %v325, %v327
    %v329 = vrot.slane %v321, %v328
    %v331 = vunpack.c.l.s4 1983009808
    %v332 = vunpack.c.0.s8 %v331
    %v333 = vlaneseq
    %v334 = vshrl.u32 %v333, 7
    %v335 = vsub.s32 %v332, %v334
    %v336 = vrot.slane %v322, %v335
    %v337 = vcombine.low %v313, %v329
    %v338 = vcombine.high %v313, %v329
    %v340 = vunpack.c.l.s4 1934713408
    %v341 = vunpack.c.0.s8 %v340
    %v342 = vlaneseq
    %v343 = vshrl.u32 %v342, 7
    %v344 = vsub.s32 %v341, %v343
    %v345 = vrot.slane %v337, %v344
    %v347 = vunpack.c.l.s4 1934713408
    %v348 = vunpack.c.0.s8 %v347
    %v349 = vlaneseq
    %v350 = vshrl.u32 %v349, 7
    %v351 = vsub.s32 %v348, %v350
    %v352 = vrot.slane %v338, %v351
    %v353 = vcombine.low %v320, %v336
    %v354 = vcombine.high %v320, %v336
    %v356 = vunpack.c.l.s4 1934713408
    %v357 = vunpack.c.0.s8 %v356
    %v358 = vlaneseq
    %v359 = vshrl.u32 %v358, 7
    %v360 = vsub.s32 %v357, %v359
    %v361 = vrot.slane %v353, %v360
    %v363 = vunpack.c.l.s4 1934713408
    %v364 = vunpack.c.0.s8 %v363
    %v365 = vlaneseq
    %v366 = vshrl.u32 %v365, 7
    %v367 = vsub.s32 %v364, %v366
    %v368 = vrot.slane %v354, %v367
    %v369 = vcombine.high %v345, 0.0
    %v370 = vcombine.high %v352, 0.0
    %v371 = vcombine.high %v361, 0.0
    %v372 = vcombine.high %v368, 0.0
    %v373 = vcombine.low %v345, %v352
    %v375 = vunpack.c.l.s4 1983009808
    %v376 = vunpack.c.0.s8 %v375
    %v377 = vlaneseq
    %v378 = vshrl.u32 %v377, 7
    %v379 = vsub.s32 %v376, %v378
    %v380 = vrot.slane %v373, %v379
    %v381 = vcombine.low %v369, %v370
    %v383 = vunpack.c.l.s4 1983009808
    %v384 = vunpack.c.0.s8 %v383
    %v385 = vlaneseq
    %v386 = vshrl.u32 %v385, 7
    %v387 = vsub.s32 %v384, %v386
    %v388 = vrot.slane %v381, %v387
    %v389 = vcombine.low %v361, %v368
    %v391 = vunpack.c.l.s4 1983009808
    %v392 = vunpack.c.0.s8 %v391
    %v393 = vlaneseq
    %v394 = vshrl.u32 %v393, 7
    %v395 = vsub.s32 %v392, %v394
    %v396 = vrot.slane %v389, %v395
    %v397 = vcombine.low %v371, %v372
    %v399 = vunpack.c.l.s4 1983009808
    %v400 = vunpack.c.0.s8 %v399
    %v401 = vlaneseq
    %v402 = vshrl.u32 %v401, 7
    %v403 = vsub.s32 %v400, %v402
    %v404 = vrot.slane %v397, %v403
    %v405 = vcombine.low %v380, %v388
    %v406 = vcombine.high %v380, %v388
    %v408 = vunpack.c.l.s4 1934713408
    %v409 = vunpack.c.0.s8 %v408
    %v410 = vlaneseq
    %v411 = vshrl.u32 %v410, 7
    %v412 = vsub.s32 %v409, %v411
    %v413 = vrot.slane %v405, %v412
    %v415 = vunpack.c.l.s4 1934713408
    %v416 = vunpack.c.0.s8 %v415
    %v417 = vlaneseq
    %v418 = vshrl.u32 %v417, 7
    %v419 = vsub.s32 %v416, %v418
    %v420 = vrot.slane %v406, %v419
    %v421 = vcombine.low %v396, %v404
    %v422 = vcombine.high %v396, %v404
    %v424 = vunpack.c.l.s4 1934713408
    %v425 = vunpack.c.0.s8 %v424
    %v426 = vlaneseq
    %v427 = vshrl.u32 %v426, 7
    %v428 = vsub.s32 %v425, %v427
    %v429 = vrot.slane %v421, %v428
    %v431 = vunpack.c.l.s4 1934713408
    %v432 = vunpack.c.0.s8 %v431
    %v433 = vlaneseq
    %v434 = vshrl.u32 %v433, 7
    %v435 = vsub.s32 %v432, %v434
    %v436 = vrot.slane %v422, %v435
    %v437 = vcombine.low %v413, %v429
    %v438 = vcombine.high %v413, %v429
    %v439 = vcombine.low %v420, %v436
    %v440 = vcombine.high %v420, %v436
    %v441 = vpack.c.bf16 %v437, %v437
    %v442 = vpack.c.bf16 %v438, %v438
    %v443 = vpack.c.bf16 %v439, %v439
    %v444 = vpack.c.bf16 %v440, %v440
    %446 = vrot.lane.b32.xlu0 %v218, 120
    %v447 = vpop.permute.xlu0 %446
    %449 = vrot.lane.b32.xlu0 %v218, 112
    %v450 = vpop.permute.xlu0 %449
    %452 = vrot.lane.b32.xlu0 %v218, 104
    %v453 = vpop.permute.xlu0 %452
    %v455 = vcombine.low %v218, %v450
    %v456 = vcombine.high %v218, %v450
    %v458 = vunpack.c.l.s4 1983009808
    %v459 = vunpack.c.0.s8 %v458
    %v460 = vlaneseq
    %v461 = vshrl.u32 %v460, 7
    %v462 = vsub.s32 %v459, %v461
    %v463 = vrot.slane %v455, %v462
    %v465 = vunpack.c.l.s4 1983009808
    %v466 = vunpack.c.0.s8 %v465
    %v467 = vlaneseq
    %v468 = vshrl.u32 %v467, 7
    %v469 = vsub.s32 %v466, %v468
    %v470 = vrot.slane %v456, %v469
    %v471 = vcombine.low %v447, %v453
    %v472 = vcombine.high %v447, %v453
    %v474 = vunpack.c.l.s4 1983009808
    %v475 = vunpack.c.0.s8 %v474
    %v476 = vlaneseq
    %v477 = vshrl.u32 %v476, 7
    %v478 = vsub.s32 %v475, %v477
    %v479 = vrot.slane %v471, %v478
    %v481 = vunpack.c.l.s4 1983009808
    %v482 = vunpack.c.0.s8 %v481
    %v483 = vlaneseq
    %v484 = vshrl.u32 %v483, 7
    %v485 = vsub.s32 %v482, %v484
    %v486 = vrot.slane %v472, %v485
    %v487 = vcombine.low %v463, %v479
    %v488 = vcombine.high %v463, %v479
    %v490 = vunpack.c.l.s4 1934713408
    %v491 = vunpack.c.0.s8 %v490
    %v492 = vlaneseq
    %v493 = vshrl.u32 %v492, 7
    %v494 = vsub.s32 %v491, %v493
    %v495 = vrot.slane %v487, %v494
    %v497 = vunpack.c.l.s4 1934713408
    %v498 = vunpack.c.0.s8 %v497
    %v499 = vlaneseq
    %v500 = vshrl.u32 %v499, 7
    %v501 = vsub.s32 %v498, %v500
    %v502 = vrot.slane %v488, %v501
    %v503 = vcombine.low %v470, %v486
    %v504 = vcombine.high %v470, %v486
    %v506 = vunpack.c.l.s4 1934713408
    %v507 = vunpack.c.0.s8 %v506
    %v508 = vlaneseq
    %v509 = vshrl.u32 %v508, 7
    %v510 = vsub.s32 %v507, %v509
    %v511 = vrot.slane %v503, %v510
    %v513 = vunpack.c.l.s4 1934713408
    %v514 = vunpack.c.0.s8 %v513
    %v515 = vlaneseq
    %v516 = vshrl.u32 %v515, 7
    %v517 = vsub.s32 %v514, %v516
    %v518 = vrot.slane %v504, %v517
    %v519 = vcombine.high %v495, 0.0
    %v520 = vcombine.high %v502, 0.0
    %v521 = vcombine.high %v511, 0.0
    %v522 = vcombine.high %v518, 0.0
    %v523 = vcombine.low %v495, %v502
    %v525 = vunpack.c.l.s4 1983009808
    %v526 = vunpack.c.0.s8 %v525
    %v527 = vlaneseq
    %v528 = vshrl.u32 %v527, 7
    %v529 = vsub.s32 %v526, %v528
    %v530 = vrot.slane %v523, %v529
    %v531 = vcombine.low %v519, %v520
    %v533 = vunpack.c.l.s4 1983009808
    %v534 = vunpack.c.0.s8 %v533
    %v535 = vlaneseq
    %v536 = vshrl.u32 %v535, 7
    %v537 = vsub.s32 %v534, %v536
    %v538 = vrot.slane %v531, %v537
    %v539 = vcombine.low %v511, %v518
    %v541 = vunpack.c.l.s4 1983009808
    %v542 = vunpack.c.0.s8 %v541
    %v543 = vlaneseq
    %v544 = vshrl.u32 %v543, 7
    %v545 = vsub.s32 %v542, %v544
    %v546 = vrot.slane %v539, %v545
    %v547 = vcombine.low %v521, %v522
    %v549 = vunpack.c.l.s4 1983009808
    %v550 = vunpack.c.0.s8 %v549
    %v551 = vlaneseq
    %v552 = vshrl.u32 %v551, 7
    %v553 = vsub.s32 %v550, %v552
    %v554 = vrot.slane %v547, %v553
    %v555 = vcombine.low %v530, %v538
    %v556 = vcombine.high %v530, %v538
    %v558 = vunpack.c.l.s4 1934713408
    %v559 = vunpack.c.0.s8 %v558
    %v560 = vlaneseq
    %v561 = vshrl.u32 %v560, 7
    %v562 = vsub.s32 %v559, %v561
    %v563 = vrot.slane %v555, %v562
    %v565 = vunpack.c.l.s4 1934713408
    %v566 = vunpack.c.0.s8 %v565
    %v567 = vlaneseq
    %v568 = vshrl.u32 %v567, 7
    %v569 = vsub.s32 %v566, %v568
    %v570 = vrot.slane %v556, %v569
    %v571 = vcombine.low %v546, %v554
    %v572 = vcombine.high %v546, %v554
    %v574 = vunpack.c.l.s4 1934713408
    %v575 = vunpack.c.0.s8 %v574
    %v576 = vlaneseq
    %v577 = vshrl.u32 %v576, 7
    %v578 = vsub.s32 %v575, %v577
    %v579 = vrot.slane %v571, %v578
    %v581 = vunpack.c.l.s4 1934713408
    %v582 = vunpack.c.0.s8 %v581
    %v583 = vlaneseq
    %v584 = vshrl.u32 %v583, 7
    %v585 = vsub.s32 %v582, %v584
    %v586 = vrot.slane %v572, %v585
    %v587 = vcombine.low %v563, %v579
    %v588 = vcombine.high %v563, %v579
    %v589 = vcombine.low %v570, %v586
    %v590 = vcombine.high %v570, %v586
    %v591 = vpack.c.bf16 %v587, %v587
    %v592 = vpack.c.bf16 %v588, %v588
    %v593 = vpack.c.bf16 %v589, %v589
    %v594 = vpack.c.bf16 %v590, %v590
    %596 = vrot.lane.b32.xlu0 %v282, 120
    %v597 = vpop.permute.xlu0 %596
    %599 = vrot.lane.b32.xlu0 %v282, 112
    %v600 = vpop.permute.xlu0 %599
    %602 = vrot.lane.b32.xlu0 %v282, 104
    %v603 = vpop.permute.xlu0 %602
    %v605 = vcombine.low %v282, %v600
    %v606 = vcombine.high %v282, %v600
    %v608 = vunpack.c.l.s4 1983009808
    %v609 = vunpack.c.0.s8 %v608
    %v610 = vlaneseq
    %v611 = vshrl.u32 %v610, 7
    %v612 = vsub.s32 %v609, %v611
    %v613 = vrot.slane %v605, %v612
    %v615 = vunpack.c.l.s4 1983009808
    %v616 = vunpack.c.0.s8 %v615
    %v617 = vlaneseq
    %v618 = vshrl.u32 %v617, 7
    %v619 = vsub.s32 %v616, %v618
    %v620 = vrot.slane %v606, %v619
    %v621 = vcombine.low %v597, %v603
    %v622 = vcombine.high %v597, %v603
    %v624 = vunpack.c.l.s4 1983009808
    %v625 = vunpack.c.0.s8 %v624
    %v626 = vlaneseq
    %v627 = vshrl.u32 %v626, 7
    %v628 = vsub.s32 %v625, %v627
    %v629 = vrot.slane %v621, %v628
    %v631 = vunpack.c.l.s4 1983009808
    %v632 = vunpack.c.0.s8 %v631
    %v633 = vlaneseq
    %v634 = vshrl.u32 %v633, 7
    %v635 = vsub.s32 %v632, %v634
    %v636 = vrot.slane %v622, %v635
    %v637 = vcombine.low %v613, %v629
    %v638 = vcombine.high %v613, %v629
    %v640 = vunpack.c.l.s4 1934713408
    %v641 = vunpack.c.0.s8 %v640
    %v642 = vlaneseq
    %v643 = vshrl.u32 %v642, 7
    %v644 = vsub.s32 %v641, %v643
    %v645 = vrot.slane %v637, %v644
    %v647 = vunpack.c.l.s4 1934713408
    %v648 = vunpack.c.0.s8 %v647
    %v649 = vlaneseq
    %v650 = vshrl.u32 %v649, 7
    %v651 = vsub.s32 %v648, %v650
    %v652 = vrot.slane %v638, %v651
    %v653 = vcombine.low %v620, %v636
    %v654 = vcombine.high %v620, %v636
    %v656 = vunpack.c.l.s4 1934713408
    %v657 = vunpack.c.0.s8 %v656
    %v658 = vlaneseq
    %v659 = vshrl.u32 %v658, 7
    %v660 = vsub.s32 %v657, %v659
    %v661 = vrot.slane %v653, %v660
    %v663 = vunpack.c.l.s4 1934713408
    %v664 = vunpack.c.0.s8 %v663
    %v665 = vlaneseq
    %v666 = vshrl.u32 %v665, 7
    %v667 = vsub.s32 %v664, %v666
    %v668 = vrot.slane %v654, %v667
    %v669 = vcombine.high %v645, 0.0
    %v670 = vcombine.high %v652, 0.0
    %v671 = vcombine.high %v661, 0.0
    %v672 = vcombine.high %v668, 0.0
    %v673 = vcombine.low %v645, %v652
    %v675 = vunpack.c.l.s4 1983009808
    %v676 = vunpack.c.0.s8 %v675
    %v677 = vlaneseq
    %v678 = vshrl.u32 %v677, 7
    %v679 = vsub.s32 %v676, %v678
    %v680 = vrot.slane %v673, %v679
    %v681 = vcombine.low %v669, %v670
    %v683 = vunpack.c.l.s4 1983009808
    %v684 = vunpack.c.0.s8 %v683
    %v685 = vlaneseq
    %v686 = vshrl.u32 %v685, 7
    %v687 = vsub.s32 %v684, %v686
    %v688 = vrot.slane %v681, %v687
    %v689 = vcombine.low %v661, %v668
    %v691 = vunpack.c.l.s4 1983009808
    %v692 = vunpack.c.0.s8 %v691
    %v693 = vlaneseq
    %v694 = vshrl.u32 %v693, 7
    %v695 = vsub.s32 %v692, %v694
    %v696 = vrot.slane %v689, %v695
    %v697 = vcombine.low %v671, %v672
    %v699 = vunpack.c.l.s4 1983009808
    %v700 = vunpack.c.0.s8 %v699
    %v701 = vlaneseq
    %v702 = vshrl.u32 %v701, 7
    %v703 = vsub.s32 %v700, %v702
    %v704 = vrot.slane %v697, %v703
    %v705 = vcombine.low %v680, %v688
    %v706 = vcombine.high %v680, %v688
    %v708 = vunpack.c.l.s4 1934713408
    %v709 = vunpack.c.0.s8 %v708
    %v710 = vlaneseq
    %v711 = vshrl.u32 %v710, 7
    %v712 = vsub.s32 %v709, %v711
    %v713 = vrot.slane %v705, %v712
    %v715 = vunpack.c.l.s4 1934713408
    %v716 = vunpack.c.0.s8 %v715
    %v717 = vlaneseq
    %v718 = vshrl.u32 %v717, 7
    %v719 = vsub.s32 %v716, %v718
    %v720 = vrot.slane %v706, %v719
    %v721 = vcombine.low %v696, %v704
    %v722 = vcombine.high %v696, %v704
    %v724 = vunpack.c.l.s4 1934713408
    %v725 = vunpack.c.0.s8 %v724
    %v726 = vlaneseq
    %v727 = vshrl.u32 %v726, 7
    %v728 = vsub.s32 %v725, %v727
    %v729 = vrot.slane %v721, %v728
    %v731 = vunpack.c.l.s4 1934713408
    %v732 = vunpack.c.0.s8 %v731
    %v733 = vlaneseq
    %v734 = vshrl.u32 %v733, 7
    %v735 = vsub.s32 %v732, %v734
    %v736 = vrot.slane %v722, %v735
    %v737 = vcombine.low %v713, %v729
    %v738 = vcombine.high %v713, %v729
    %v739 = vcombine.low %v720, %v736
    %v740 = vcombine.high %v720, %v736
    %v741 = vpack.c.bf16 %v737, %v737
    %v742 = vpack.c.bf16 %v738, %v738
    %v743 = vpack.c.bf16 %v739, %v739
    %v744 = vpack.c.bf16 %v740, %v740
    %vm745 = vcmask 64512
    %v747 = vsel %vm745, %v441, 0
    %v750 = vsel %vm745, %v591, 0
    %752 = vmatprep.subr.bf16.mxu0 0
    %753 = vmatpush1.bf16.xpose.msra.mxu0 %v750
    %754 = vmatprep.subr.bf16.mxu0 0
    %755 = vmatpush1.bf16.xpose.msra.mxu0 0
    %756 = vmatprep.subr.bf16.mxu0 0
    %757 = vmatpush1.bf16.xpose.msra.mxu0 0
    %758 = vmatprep.subr.bf16.mxu0 0
    %759 = vmatpush1.bf16.xpose.msra.mxu0 0
    %760 = vmatprep.subr.bf16.mxu0 0
    %761 = vmatpush1.bf16.xpose.msra.mxu0 0
    %762 = vmatprep.subr.bf16.mxu0 0
    %763 = vmatpush1.bf16.xpose.msra.mxu0 0
    %764 = vmatprep.subr.bf16.mxu0 0
    %765 = vmatpush1.bf16.xpose.msra.mxu0 0
    %766 = vmatprep.subr.bf16.mxu0 0
    %767 = vmatpush1.bf16.xpose.msra.mxu0 0
    %768 = vmatprep.subr.bf16.mxu0 0
    %769 = vmatpush1.bf16.xpose.msra.mxu0 0
    %770 = vmatprep.subr.bf16.mxu0 0
    %771 = vmatpush1.bf16.xpose.msra.mxu0 0
    %772 = vmatprep.subr.bf16.mxu0 0
    %773 = vmatpush1.bf16.xpose.msra.mxu0 0
    %774 = vmatprep.subr.bf16.mxu0 0
    %775 = vmatpush1.bf16.xpose.msra.mxu0 0
    %776 = vmatprep.subr.bf16.mxu0 0
    %777 = vmatpush1.bf16.xpose.msra.mxu0 0
    %778 = vmatprep.subr.bf16.mxu0 0
    %779 = vmatpush1.bf16.xpose.msra.mxu0 0
    %780 = vmatprep.subr.bf16.mxu0 0
    %781 = vmatpush1.bf16.xpose.msra.mxu0 0
    %782 = vmatprep.subr.bf16.mxu0 0
    %783 = vmatpush1.bf16.xpose.msra.mxu0 0
    %784 = vmatprep.mubr.bf16.mxu0 0
    %785 = vmatmul.mubr.bf16.gmra.mrb[0].mxu0 %v747
    %v786 = vpop.f32.mrb[0].mxu0
    %v787 = vadd.f32 0.0, %v786
    %v788 = vpop.f32.mrb[0].mxu0
    %v789 = vpop.f32.mrb[0].mxu0
    %v790 = vpop.f32.mrb[0].mxu0
    %791 = vdwg.mxu0
    %v793 = vsel %vm745, %v442, 0
    %v796 = vsel %vm745, %v592, 0
    %798 = vmatprep.subr.bf16.mxu0 0
    %799 = vmatpush1.bf16.xpose.msra.mxu0 %v796
    %800 = vmatprep.subr.bf16.mxu0 0
    %801 = vmatpush1.bf16.xpose.msra.mxu0 0
    %802 = vmatprep.subr.bf16.mxu0 0
    %803 = vmatpush1.bf16.xpose.msra.mxu0 0
    %804 = vmatprep.subr.bf16.mxu0 0
    %805 = vmatpush1.bf16.xpose.msra.mxu0 0
    %806 = vmatprep.subr.bf16.mxu0 0
    %807 = vmatpush1.bf16.xpose.msra.mxu0 0
    %808 = vmatprep.subr.bf16.mxu0 0
    %809 = vmatpush1.bf16.xpose.msra.mxu0 0
    %810 = vmatprep.subr.bf16.mxu0 0
    %811 = vmatpush1.bf16.xpose.msra.mxu0 0
    %812 = vmatprep.subr.bf16.mxu0 0
    %813 = vmatpush1.bf16.xpose.msra.mxu0 0
    %814 = vmatprep.subr.bf16.mxu0 0
    %815 = vmatpush1.bf16.xpose.msra.mxu0 0
    %816 = vmatprep.subr.bf16.mxu0 0
    %817 = vmatpush1.bf16.xpose.msra.mxu0 0
    %818 = vmatprep.subr.bf16.mxu0 0
    %819 = vmatpush1.bf16.xpose.msra.mxu0 0
    %820 = vmatprep.subr.bf16.mxu0 0
    %821 = vmatpush1.bf16.xpose.msra.mxu0 0
    %822 = vmatprep.subr.bf16.mxu0 0
    %823 = vmatpush1.bf16.xpose.msra.mxu0 0
    %824 = vmatprep.subr.bf16.mxu0 0
    %825 = vmatpush1.bf16.xpose.msra.mxu0 0
    %826 = vmatprep.subr.bf16.mxu0 0
    %827 = vmatpush1.bf16.xpose.msra.mxu0 0
    %828 = vmatprep.subr.bf16.mxu0 0
    %829 = vmatpush1.bf16.xpose.msra.mxu0 0
    %830 = vmatprep.mubr.bf16.mxu0 0
    %831 = vmatmul.mubr.bf16.gmra.mrb[0].mxu0 %v793
    %v832 = vpop.f32.mrb[0].mxu0
    %v833 = vadd.f32 0.0, %v832
    %v834 = vpop.f32.mrb[0].mxu0
    %v835 = vpop.f32.mrb[0].mxu0
    %v836 = vpop.f32.mrb[0].mxu0
    %837 = vdwg.mxu0
    %v839 = vsel %vm745, %v443, 0
    %v842 = vsel %vm745, %v593, 0
    %844 = vmatprep.subr.bf16.mxu0 0
    %845 = vmatpush1.bf16.xpose.msra.mxu0 %v842
    %846 = vmatprep.subr.bf16.mxu0 0
    %847 = vmatpush1.bf16.xpose.msra.mxu0 0
    %848 = vmatprep.subr.bf16.mxu0 0
    %849 = vmatpush1.bf16.xpose.msra.mxu0 0
    %850 = vmatprep.subr.bf16.mxu0 0
    %851 = vmatpush1.bf16.xpose.msra.mxu0 0
    %852 = vmatprep.subr.bf16.mxu0 0
    %853 = vmatpush1.bf16.xpose.msra.mxu0 0
    %854 = vmatprep.subr.bf16.mxu0 0
    %855 = vmatpush1.bf16.xpose.msra.mxu0 0
    %856 = vmatprep.subr.bf16.mxu0 0
    %857 = vmatpush1.bf16.xpose.msra.mxu0 0
    %858 = vmatprep.subr.bf16.mxu0 0
    %859 = vmatpush1.bf16.xpose.msra.mxu0 0
    %860 = vmatprep.subr.bf16.mxu0 0
    %861 = vmatpush1.bf16.xpose.msra.mxu0 0
    %862 = vmatprep.subr.bf16.mxu0 0
    %863 = vmatpush1.bf16.xpose.msra.mxu0 0
    %864 = vmatprep.subr.bf16.mxu0 0
    %865 = vmatpush1.bf16.xpose.msra.mxu0 0
    %866 = vmatprep.subr.bf16.mxu0 0
    %867 = vmatpush1.bf16.xpose.msra.mxu0 0
    %868 = vmatprep.subr.bf16.mxu0 0
    %869 = vmatpush1.bf16.xpose.msra.mxu0 0
    %870 = vmatprep.subr.bf16.mxu0 0
    %871 = vmatpush1.bf16.xpose.msra.mxu0 0
    %872 = vmatprep.subr.bf16.mxu0 0
    %873 = vmatpush1.bf16.xpose.msra.mxu0 0
    %874 = vmatprep.subr.bf16.mxu0 0
    %875 = vmatpush1.bf16.xpose.msra.mxu0 0
    %876 = vmatprep.mubr.bf16.mxu0 0
    %877 = vmatmul.mubr.bf16.gmra.mrb[0].mxu0 %v839
    %v878 = vpop.f32.mrb[0].mxu0
    %v879 = vadd.f32 0.0, %v878
    %v880 = vpop.f32.mrb[0].mxu0
    %v881 = vpop.f32.mrb[0].mxu0
    %v882 = vpop.f32.mrb[0].mxu0
    %883 = vdwg.mxu0
    %v885 = vsel %vm745, %v444, 0
    %v888 = vsel %vm745, %v594, 0
    %890 = vmatprep.subr.bf16.mxu0 0
    %891 = vmatpush1.bf16.xpose.msra.mxu0 %v888
    %892 = vmatprep.subr.bf16.mxu0 0
    %893 = vmatpush1.bf16.xpose.msra.mxu0 0
    %894 = vmatprep.subr.bf16.mxu0 0
    %895 = vmatpush1.bf16.xpose.msra.mxu0 0
    %896 = vmatprep.subr.bf16.mxu0 0
    %897 = vmatpush1.bf16.xpose.msra.mxu0 0
    %898 = vmatprep.subr.bf16.mxu0 0
    %899 = vmatpush1.bf16.xpose.msra.mxu0 0
    %900 = vmatprep.subr.bf16.mxu0 0
    %901 = vmatpush1.bf16.xpose.msra.mxu0 0
    %902 = vmatprep.subr.bf16.mxu0 0
    %903 = vmatpush1.bf16.xpose.msra.mxu0 0
    %904 = vmatprep.subr.bf16.mxu0 0
    %905 = vmatpush1.bf16.xpose.msra.mxu0 0
    %906 = vmatprep.subr.bf16.mxu0 0
    %907 = vmatpush1.bf16.xpose.msra.mxu0 0
    %908 = vmatprep.subr.bf16.mxu0 0
    %909 = vmatpush1.bf16.xpose.msra.mxu0 0
    %910 = vmatprep.subr.bf16.mxu0 0
    %911 = vmatpush1.bf16.xpose.msra.mxu0 0
    %912 = vmatprep.subr.bf16.mxu0 0
    %913 = vmatpush1.bf16.xpose.msra.mxu0 0
    %914 = vmatprep.subr.bf16.mxu0 0
    %915 = vmatpush1.bf16.xpose.msra.mxu0 0
    %916 = vmatprep.subr.bf16.mxu0 0
    %917 = vmatpush1.bf16.xpose.msra.mxu0 0
    %918 = vmatprep.subr.bf16.mxu0 0
    %919 = vmatpush1.bf16.xpose.msra.mxu0 0
    %920 = vmatprep.subr.bf16.mxu0 0
    %921 = vmatpush1.bf16.xpose.msra.mxu0 0
    %922 = vmatprep.mubr.bf16.mxu0 0
    %923 = vmatmul.mubr.bf16.gmra.mrb[0].mxu0 %v885
    %v924 = vpop.f32.mrb[0].mxu0
    %v925 = vadd.f32 0.0, %v924
    %v926 = vpop.f32.mrb[0].mxu0
    %v927 = vpop.f32.mrb[0].mxu0
    %v928 = vpop.f32.mrb[0].mxu0
    %929 = vdwg.mxu0
    %v930 = vsel %vm745, %v787, -inf
    %931 = vmax.xlane.f32.xlu0 %v930
    %v932 = vpop.xlane.xlu0 %931
    %v933 = vsel %vm745, %v833, -inf
    %934 = vmax.xlane.f32.xlu0 %v933
    %v935 = vpop.xlane.xlu0 %934
    %v936 = vsel %vm745, %v879, -inf
    %937 = vmax.xlane.f32.xlu0 %v936
    %v938 = vpop.xlane.xlu0 %937
    %v939 = vsel %vm745, %v925, -inf
    %940 = vmax.xlane.f32.xlu0 %v939
    %v941 = vpop.xlane.xlu0 %940
    %v942 = vsub.f32 %v787, %v932
    %v943 = vsub.f32 %v833, %v935
    %v944 = vsub.f32 %v879, %v938
    %v945 = vsub.f32 %v925, %v941
    %v946 = vmul.f32 %v942, 1.442695
    %v947 = vpow.pop %v946
    %v948 = vmul.f32 %v943, 1.442695
    %v949 = vpow.pop %v948
    %v950 = vmul.f32 %v944, 1.442695
    %v951 = vpow.pop %v950
    %v952 = vmul.f32 %v945, 1.442695
    %v953 = vpow.pop %v952
    %v954 = vsel %vm745, %v947, 0.0
    %955 = vadd.xlane.f32.xlu0 %v954
    %v956 = vpop.xlane.xlu0 %955
    %v957 = vsel %vm745, %v949, 0.0
    %958 = vadd.xlane.f32.xlu0 %v957
    %v959 = vpop.xlane.xlu0 %958
    %v960 = vsel %vm745, %v951, 0.0
    %961 = vadd.xlane.f32.xlu0 %v960
    %v962 = vpop.xlane.xlu0 %961
    %v963 = vsel %vm745, %v953, 0.0
    %964 = vadd.xlane.f32.xlu0 %v963
    %v965 = vpop.xlane.xlu0 %964
    %v966 = vrcp.pop %v956
    %v967 = vrcp.pop %v959
    %v968 = vrcp.pop %v962
    %v969 = vrcp.pop %v965
    %v970 = vmul.f32 %v947, %v966
    %v971 = vmul.f32 %v949, %v967
    %v972 = vmul.f32 %v951, %v968
    %v973 = vmul.f32 %v953, %v969
    %v974 = vpack.c.bf16 %v970, %v970
    %v975 = vpack.c.bf16 %v971, %v971
    %v976 = vpack.c.bf16 %v972, %v972
    %v977 = vpack.c.bf16 %v973, %v973
    %v979 = vsel %vm745, %v974, 0
    %vm981 = vcmask 1043456
    %v983 = vsel %vm981, %v741, 0
    %985 = vmatprep.subr.bf16.mxu0 0
    %986 = vmatpush1.bf16.msra.mxu0 %v983
    %987 = vmatprep.subr.bf16.mxu0 0
    %988 = vmatpush1.bf16.msra.mxu0 0
    %989 = vmatprep.subr.bf16.mxu0 0
    %990 = vmatpush1.bf16.msra.mxu0 0
    %991 = vmatprep.subr.bf16.mxu0 0
    %992 = vmatpush1.bf16.msra.mxu0 0
    %993 = vmatprep.subr.bf16.mxu0 0
    %994 = vmatpush1.bf16.msra.mxu0 0
    %995 = vmatprep.subr.bf16.mxu0 0
    %996 = vmatpush1.bf16.msra.mxu0 0
    %997 = vmatprep.subr.bf16.mxu0 0
    %998 = vmatpush1.bf16.msra.mxu0 0
    %999 = vmatprep.subr.bf16.mxu0 0
    %1000 = vmatpush1.bf16.msra.mxu0 0
    %1001 = vmatprep.subr.bf16.mxu0 0
    %1002 = vmatpush1.bf16.msra.mxu0 0
    %1003 = vmatprep.subr.bf16.mxu0 0
    %1004 = vmatpush1.bf16.msra.mxu0 0
    %1005 = vmatprep.subr.bf16.mxu0 0
    %1006 = vmatpush1.bf16.msra.mxu0 0
    %1007 = vmatprep.subr.bf16.mxu0 0
    %1008 = vmatpush1.bf16.msra.mxu0 0
    %1009 = vmatprep.subr.bf16.mxu0 0
    %1010 = vmatpush1.bf16.msra.mxu0 0
    %1011 = vmatprep.subr.bf16.mxu0 0
    %1012 = vmatpush1.bf16.msra.mxu0 0
    %1013 = vmatprep.subr.bf16.mxu0 0
    %1014 = vmatpush1.bf16.msra.mxu0 0
    %1015 = vmatprep.subr.bf16.mxu0 0
    %1016 = vmatpush1.bf16.msra.mxu0 0
    %1017 = vmatprep.mubr.bf16.mxu0 0
    %1018 = vmatmul.mubr.bf16.gmra.mrb[0].mxu0 %v979
    %v1019 = vpop.f32.mrb[0].mxu0
    %v1020 = vadd.f32 0.0, %v1019
    %v1021 = vpop.f32.mrb[0].mxu0
    %v1022 = vpop.f32.mrb[0].mxu0
    %v1023 = vpop.f32.mrb[0].mxu0
    %1024 = vdwg.mxu0
    %v1026 = vsel %vm745, %v975, 0
    %v1029 = vsel %vm981, %v742, 0
    %1031 = vmatprep.subr.bf16.mxu0 0
    %1032 = vmatpush1.bf16.msra.mxu0 %v1029
    %1033 = vmatprep.subr.bf16.mxu0 0
    %1034 = vmatpush1.bf16.msra.mxu0 0
    %1035 = vmatprep.subr.bf16.mxu0 0
    %1036 = vmatpush1.bf16.msra.mxu0 0
    %1037 = vmatprep.subr.bf16.mxu0 0
    %1038 = vmatpush1.bf16.msra.mxu0 0
    %1039 = vmatprep.subr.bf16.mxu0 0
    %1040 = vmatpush1.bf16.msra.mxu0 0
    %1041 = vmatprep.subr.bf16.mxu0 0
    %1042 = vmatpush1.bf16.msra.mxu0 0
    %1043 = vmatprep.subr.bf16.mxu0 0
    %1044 = vmatpush1.bf16.msra.mxu0 0
    %1045 = vmatprep.subr.bf16.mxu0 0
    %1046 = vmatpush1.bf16.msra.mxu0 0
    %1047 = vmatprep.subr.bf16.mxu0 0
    %1048 = vmatpush1.bf16.msra.mxu0 0
    %1049 = vmatprep.subr.bf16.mxu0 0
    %1050 = vmatpush1.bf16.msra.mxu0 0
    %1051 = vmatprep.subr.bf16.mxu0 0
    %1052 = vmatpush1.bf16.msra.mxu0 0
    %1053 = vmatprep.subr.bf16.mxu0 0
    %1054 = vmatpush1.bf16.msra.mxu0 0
    %1055 = vmatprep.subr.bf16.mxu0 0
    %1056 = vmatpush1.bf16.msra.mxu0 0
    %1057 = vmatprep.subr.bf16.mxu0 0
    %1058 = vmatpush1.bf16.msra.mxu0 0
    %1059 = vmatprep.subr.bf16.mxu0 0
    %1060 = vmatpush1.bf16.msra.mxu0 0
    %1061 = vmatprep.subr.bf16.mxu0 0
    %1062 = vmatpush1.bf16.msra.mxu0 0
    %1063 = vmatprep.mubr.bf16.mxu0 0
    %1064 = vmatmul.mubr.bf16.gmra.mrb[0].mxu0 %v1026
    %v1065 = vpop.f32.mrb[0].mxu0
    %v1066 = vadd.f32 0.0, %v1065
    %v1067 = vpop.f32.mrb[0].mxu0
    %v1068 = vpop.f32.mrb[0].mxu0
    %v1069 = vpop.f32.mrb[0].mxu0
    %1070 = vdwg.mxu0
    %v1072 = vsel %vm745, %v976, 0
    %v1075 = vsel %vm981, %v743, 0
    %1077 = vmatprep.subr.bf16.mxu0 0
    %1078 = vmatpush1.bf16.msra.mxu0 %v1075
    %1079 = vmatprep.subr.bf16.mxu0 0
    %1080 = vmatpush1.bf16.msra.mxu0 0
    %1081 = vmatprep.subr.bf16.mxu0 0
    %1082 = vmatpush1.bf16.msra.mxu0 0
    %1083 = vmatprep.subr.bf16.mxu0 0
    %1084 = vmatpush1.bf16.msra.mxu0 0
    %1085 = vmatprep.subr.bf16.mxu0 0
    %1086 = vmatpush1.bf16.msra.mxu0 0
    %1087 = vmatprep.subr.bf16.mxu0 0
    %1088 = vmatpush1.bf16.msra.mxu0 0
    %1089 = vmatprep.subr.bf16.mxu0 0
    %1090 = vmatpush1.bf16.msra.mxu0 0
    %1091 = vmatprep.subr.bf16.mxu0 0
    %1092 = vmatpush1.bf16.msra.mxu0 0
    %1093 = vmatprep.subr.bf16.mxu0 0
    %1094 = vmatpush1.bf16.msra.mxu0 0
    %1095 = vmatprep.subr.bf16.mxu0 0
    %1096 = vmatpush1.bf16.msra.mxu0 0
    %1097 = vmatprep.subr.bf16.mxu0 0
    %1098 = vmatpush1.bf16.msra.mxu0 0
    %1099 = vmatprep.subr.bf16.mxu0 0
    %1100 = vmatpush1.bf16.msra.mxu0 0
    %1101 = vmatprep.subr.bf16.mxu0 0
    %1102 = vmatpush1.bf16.msra.mxu0 0
    %1103 = vmatprep.subr.bf16.mxu0 0
    %1104 = vmatpush1.bf16.msra.mxu0 0
    %1105 = vmatprep.subr.bf16.mxu0 0
    %1106 = vmatpush1.bf16.msra.mxu0 0
    %1107 = vmatprep.subr.bf16.mxu0 0
    %1108 = vmatpush1.bf16.msra.mxu0 0
    %1109 = vmatprep.mubr.bf16.mxu0 0
    %1110 = vmatmul.mubr.bf16.gmra.mrb[0].mxu0 %v1072
    %v1111 = vpop.f32.mrb[0].mxu0
    %v1112 = vadd.f32 0.0, %v1111
    %v1113 = vpop.f32.mrb[0].mxu0
    %v1114 = vpop.f32.mrb[0].mxu0
    %v1115 = vpop.f32.mrb[0].mxu0
    %1116 = vdwg.mxu0
    %v1118 = vsel %vm745, %v977, 0
    %v1121 = vsel %vm981, %v744, 0
    %1123 = vmatprep.subr.bf16.mxu0 0
    %1124 = vmatpush1.bf16.msra.mxu0 %v1121
    %1125 = vmatprep.subr.bf16.mxu0 0
    %1126 = vmatpush1.bf16.msra.mxu0 0
    %1127 = vmatprep.subr.bf16.mxu0 0
    %1128 = vmatpush1.bf16.msra.mxu0 0
    %1129 = vmatprep.subr.bf16.mxu0 0
    %1130 = vmatpush1.bf16.msra.mxu0 0
    %1131 = vmatprep.subr.bf16.mxu0 0
    %1132 = vmatpush1.bf16.msra.mxu0 0
    %1133 = vmatprep.subr.bf16.mxu0 0
    %1134 = vmatpush1.bf16.msra.mxu0 0
    %1135 = vmatprep.subr.bf16.mxu0 0
    %1136 = vmatpush1.bf16.msra.mxu0 0
    %1137 = vmatprep.subr.bf16.mxu0 0
    %1138 = vmatpush1.bf16.msra.mxu0 0
    %1139 = vmatprep.subr.bf16.mxu0 0
    %1140 = vmatpush1.bf16.msra.mxu0 0
    %1141 = vmatprep.subr.bf16.mxu0 0
    %1142 = vmatpush1.bf16.msra.mxu0 0
    %1143 = vmatprep.subr.bf16.mxu0 0
    %1144 = vmatpush1.bf16.msra.mxu0 0
    %1145 = vmatprep.subr.bf16.mxu0 0
    %1146 = vmatpush1.bf16.msra.mxu0 0
    %1147 = vmatprep.subr.bf16.mxu0 0
    %1148 = vmatpush1.bf16.msra.mxu0 0
    %1149 = vmatprep.subr.bf16.mxu0 0
    %1150 = vmatpush1.bf16.msra.mxu0 0
    %1151 = vmatprep.subr.bf16.mxu0 0
    %1152 = vmatpush1.bf16.msra.mxu0 0
    %1153 = vmatprep.subr.bf16.mxu0 0
    %1154 = vmatpush1.bf16.msra.mxu0 0
    %1155 = vmatprep.mubr.bf16.mxu0 0
    %1156 = vmatmul.mubr.bf16.gmra.mrb[0].mxu0 %v1118
    %v1157 = vpop.f32.mrb[0].mxu0
    %v1158 = vadd.f32 0.0, %v1157
    %v1159 = vpop.f32.mrb[0].mxu0
    %v1160 = vpop.f32.mrb[0].mxu0
    %v1161 = vpop.f32.mrb[0].mxu0
    %1162 = vdwg.mxu0
    %v1163 = vpack.c.bf16 %v1020, %v1020
    %v1164 = vpack.c.bf16 %v1066, %v1066
    %v1165 = vpack.c.bf16 %v1112, %v1112
    %v1166 = vpack.c.bf16 %v1158, %v1158
    %v1168 = vsel %vm745, %v1163, 0
    %v1171 = vsel %vm981, %v290, 0
    %1173 = vmatprep.subr.bf16.mxu0 0
    %1174 = vmatpush1.bf16.msra.mxu0 %v1171
    %1175 = vmatprep.subr.bf16.mxu0 0
    %1176 = vmatpush1.bf16.msra.mxu0 0
    %1177 = vmatprep.subr.bf16.mxu0 0
    %1178 = vmatpush1.bf16.msra.mxu0 0
    %1179 = vmatprep.subr.bf16.mxu0 0
    %1180 = vmatpush1.bf16.msra.mxu0 0
    %1181 = vmatprep.subr.bf16.mxu0 0
    %1182 = vmatpush1.bf16.msra.mxu0 0
    %1183 = vmatprep.subr.bf16.mxu0 0
    %1184 = vmatpush1.bf16.msra.mxu0 0
    %1185 = vmatprep.subr.bf16.mxu0 0
    %1186 = vmatpush1.bf16.msra.mxu0 0
    %1187 = vmatprep.subr.bf16.mxu0 0
    %1188 = vmatpush1.bf16.msra.mxu0 0
    %1189 = vmatprep.subr.bf16.mxu0 0
    %1190 = vmatpush1.bf16.msra.mxu0 0
    %1191 = vmatprep.subr.bf16.mxu0 0
    %1192 = vmatpush1.bf16.msra.mxu0 0
    %1193 = vmatprep.subr.bf16.mxu0 0
    %1194 = vmatpush1.bf16.msra.mxu0 0
    %1195 = vmatprep.subr.bf16.mxu0 0
    %1196 = vmatpush1.bf16.msra.mxu0 0
    %1197 = vmatprep.subr.bf16.mxu0 0
    %1198 = vmatpush1.bf16.msra.mxu0 0
    %1199 = vmatprep.subr.bf16.mxu0 0
    %1200 = vmatpush1.bf16.msra.mxu0 0
    %1201 = vmatprep.subr.bf16.mxu0 0
    %1202 = vmatpush1.bf16.msra.mxu0 0
    %1203 = vmatprep.subr.bf16.mxu0 0
    %1204 = vmatpush1.bf16.msra.mxu0 0
    %1205 = vmatprep.mubr.bf16.mxu0 0
    %1206 = vmatmul.mubr.bf16.gmra.mrb[0].mxu0 %v1168
    %v1207 = vpop.f32.mrb[0].mxu0
    %v1208 = vadd.f32 0.0, %v1207
    %v1209 = vpop.f32.mrb[0].mxu0
    %v1210 = vpop.f32.mrb[0].mxu0
    %v1211 = vpop.f32.mrb[0].mxu0
    %1212 = vdwg.mxu0
    %v1214 = vsel %vm745, %v1164, 0
    %v1217 = vsel %vm981, %v291, 0
    %1219 = vmatprep.subr.bf16.mxu0 0
    %1220 = vmatpush1.bf16.msra.mxu0 %v1217
    %1221 = vmatprep.subr.bf16.mxu0 0
    %1222 = vmatpush1.bf16.msra.mxu0 0
    %1223 = vmatprep.subr.bf16.mxu0 0
    %1224 = vmatpush1.bf16.msra.mxu0 0
    %1225 = vmatprep.subr.bf16.mxu0 0
    %1226 = vmatpush1.bf16.msra.mxu0 0
    %1227 = vmatprep.subr.bf16.mxu0 0
    %1228 = vmatpush1.bf16.msra.mxu0 0
    %1229 = vmatprep.subr.bf16.mxu0 0
    %1230 = vmatpush1.bf16.msra.mxu0 0
    %1231 = vmatprep.subr.bf16.mxu0 0
    %1232 = vmatpush1.bf16.msra.mxu0 0
    %1233 = vmatprep.subr.bf16.mxu0 0
    %1234 = vmatpush1.bf16.msra.mxu0 0
    %1235 = vmatprep.subr.bf16.mxu0 0
    %1236 = vmatpush1.bf16.msra.mxu0 0
    %1237 = vmatprep.subr.bf16.mxu0 0
    %1238 = vmatpush1.bf16.msra.mxu0 0
    %1239 = vmatprep.subr.bf16.mxu0 0
    %1240 = vmatpush1.bf16.msra.mxu0 0
    %1241 = vmatprep.subr.bf16.mxu0 0
    %1242 = vmatpush1.bf16.msra.mxu0 0
    %1243 = vmatprep.subr.bf16.mxu0 0
    %1244 = vmatpush1.bf16.msra.mxu0 0
    %1245 = vmatprep.subr.bf16.mxu0 0
    %1246 = vmatpush1.bf16.msra.mxu0 0
    %1247 = vmatprep.subr.bf16.mxu0 0
    %1248 = vmatpush1.bf16.msra.mxu0 0
    %1249 = vmatprep.subr.bf16.mxu0 0
    %1250 = vmatpush1.bf16.msra.mxu0 0
    %1251 = vmatprep.mubr.bf16.mxu0 0
    %1252 = vmatmul.mubr.bf16.gmra.mrb[0].mxu0 %v1214
    %v1253 = vpop.f32.mrb[0].mxu0
    %v1254 = vadd.f32 0.0, %v1253
    %v1255 = vpop.f32.mrb[0].mxu0
    %v1256 = vpop.f32.mrb[0].mxu0
    %v1257 = vpop.f32.mrb[0].mxu0
    %1258 = vdwg.mxu0
    %v1260 = vsel %vm745, %v1165, 0
    %v1263 = vsel %vm981, %v292, 0
    %1265 = vmatprep.subr.bf16.mxu0 0
    %1266 = vmatpush1.bf16.msra.mxu0 %v1263
    %1267 = vmatprep.subr.bf16.mxu0 0
    %1268 = vmatpush1.bf16.msra.mxu0 0
    %1269 = vmatprep.subr.bf16.mxu0 0
    %1270 = vmatpush1.bf16.msra.mxu0 0
    %1271 = vmatprep.subr.bf16.mxu0 0
    %1272 = vmatpush1.bf16.msra.mxu0 0
    %1273 = vmatprep.subr.bf16.mxu0 0
    %1274 = vmatpush1.bf16.msra.mxu0 0
    %1275 = vmatprep.subr.bf16.mxu0 0
    %1276 = vmatpush1.bf16.msra.mxu0 0
    %1277 = vmatprep.subr.bf16.mxu0 0
    %1278 = vmatpush1.bf16.msra.mxu0 0
    %1279 = vmatprep.subr.bf16.mxu0 0
    %1280 = vmatpush1.bf16.msra.mxu0 0
    %1281 = vmatprep.subr.bf16.mxu0 0
    %1282 = vmatpush1.bf16.msra.mxu0 0
    %1283 = vmatprep.subr.bf16.mxu0 0
    %1284 = vmatpush1.bf16.msra.mxu0 0
    %1285 = vmatprep.subr.bf16.mxu0 0
    %1286 = vmatpush1.bf16.msra.mxu0 0
    %1287 = vmatprep.subr.bf16.mxu0 0
    %1288 = vmatpush1.bf16.msra.mxu0 0
    %1289 = vmatprep.subr.bf16.mxu0 0
    %1290 = vmatpush1.bf16.msra.mxu0 0
    %1291 = vmatprep.subr.bf16.mxu0 0
    %1292 = vmatpush1.bf16.msra.mxu0 0
    %1293 = vmatprep.subr.bf16.mxu0 0
    %1294 = vmatpush1.bf16.msra.mxu0 0
    %1295 = vmatprep.subr.bf16.mxu0 0
    %1296 = vmatpush1.bf16.msra.mxu0 0
    %1297 = vmatprep.mubr.bf16.mxu0 0
    %1298 = vmatmul.mubr.bf16.gmra.mrb[0].mxu0 %v1260
    %v1299 = vpop.f32.mrb[0].mxu0
    %v1300 = vadd.f32 0.0, %v1299
    %v1301 = vpop.f32.mrb[0].mxu0
    %v1302 = vpop.f32.mrb[0].mxu0
    %v1303 = vpop.f32.mrb[0].mxu0
    %1304 = vdwg.mxu0
    %v1306 = vsel %vm745, %v1166, 0
    %v1309 = vsel %vm981, %v293, 0
    %1311 = vmatprep.subr.bf16.mxu0 0
    %1312 = vmatpush1.bf16.msra.mxu0 %v1309
    %1313 = vmatprep.subr.bf16.mxu0 0
    %1314 = vmatpush1.bf16.msra.mxu0 0
    %1315 = vmatprep.subr.bf16.mxu0 0
    %1316 = vmatpush1.bf16.msra.mxu0 0
    %1317 = vmatprep.subr.bf16.mxu0 0
    %1318 = vmatpush1.bf16.msra.mxu0 0
    %1319 = vmatprep.subr.bf16.mxu0 0
    %1320 = vmatpush1.bf16.msra.mxu0 0
    %1321 = vmatprep.subr.bf16.mxu0 0
    %1322 = vmatpush1.bf16.msra.mxu0 0
    %1323 = vmatprep.subr.bf16.mxu0 0
    %1324 = vmatpush1.bf16.msra.mxu0 0
    %1325 = vmatprep.subr.bf16.mxu0 0
    %1326 = vmatpush1.bf16.msra.mxu0 0
    %1327 = vmatprep.subr.bf16.mxu0 0
    %1328 = vmatpush1.bf16.msra.mxu0 0
    %1329 = vmatprep.subr.bf16.mxu0 0
    %1330 = vmatpush1.bf16.msra.mxu0 0
    %1331 = vmatprep.subr.bf16.mxu0 0
    %1332 = vmatpush1.bf16.msra.mxu0 0
    %1333 = vmatprep.subr.bf16.mxu0 0
    %1334 = vmatpush1.bf16.msra.mxu0 0
    %1335 = vmatprep.subr.bf16.mxu0 0
    %1336 = vmatpush1.bf16.msra.mxu0 0
    %1337 = vmatprep.subr.bf16.mxu0 0
    %1338 = vmatpush1.bf16.msra.mxu0 0
    %1339 = vmatprep.subr.bf16.mxu0 0
    %1340 = vmatpush1.bf16.msra.mxu0 0
    %1341 = vmatprep.subr.bf16.mxu0 0
    %1342 = vmatpush1.bf16.msra.mxu0 0
    %1343 = vmatprep.mubr.bf16.mxu0 0
    %1344 = vmatmul.mubr.bf16.gmra.mrb[0].mxu0 %v1306
    %v1345 = vpop.f32.mrb[0].mxu0
    %v1346 = vadd.f32 0.0, %v1345
    %v1347 = vpop.f32.mrb[0].mxu0
    %v1348 = vpop.f32.mrb[0].mxu0
    %v1349 = vpop.f32.mrb[0].mxu0
    %1350 = vdwg.mxu0
    %v1351 = vsel %vm115, %v1208, 0.0
    %v1352 = vsel %vm115, %v1254, 0.0
    %v1353 = vadd.f32 %v1351, %v1352
    %v1354 = vsel %vm115, %v1300, 0.0
    %v1355 = vadd.f32 %v1353, %v1354
    %v1356 = vsel %vm115, %v1346, 0.0
    %v1357 = vadd.f32 %v1355, %v1356
    %v1359 = vlaneseq
    %v1360 = vshrl.u32 %v1359, 7
    %v1361 = vsub.s32 0, %v1360
    %v1362 = vrot.slane %v294, %v1361
    %v1364 = vadd.f32 %v1357, %v1362
    %1365 = vst.msk [vmem:[#allocation10] sm:$0xff] %vm115, %v1364
    %1367 = vrot.lane.b32.xlu0 %v289, 120
    %v1368 = vpop.permute.xlu0 %1367
    %1370 = vrot.lane.b32.xlu0 %v289, 112
    %v1371 = vpop.permute.xlu0 %1370
    %1373 = vrot.lane.b32.xlu0 %v289, 104
    %v1374 = vpop.permute.xlu0 %1373
    %v1376 = vcombine.low %v289, %v1371
    %v1377 = vcombine.high %v289, %v1371
    %v1379 = vunpack.c.l.s4 1983009808
    %v1380 = vunpack.c.0.s8 %v1379
    %v1381 = vlaneseq
    %v1382 = vshrl.u32 %v1381, 7
    %v1383 = vsub.s32 %v1380, %v1382
    %v1384 = vrot.slane %v1376, %v1383
    %v1386 = vunpack.c.l.s4 1983009808
    %v1387 = vunpack.c.0.s8 %v1386
    %v1388 = vlaneseq
    %v1389 = vshrl.u32 %v1388, 7
    %v1390 = vsub.s32 %v1387, %v1389
    %v1391 = vrot.slane %v1377, %v1390
    %v1392 = vcombine.low %v1368, %v1374
    %v1393 = vcombine.high %v1368, %v1374
    %v1395 = vunpack.c.l.s4 1983009808
    %v1396 = vunpack.c.0.s8 %v1395
    %v1397 = vlaneseq
    %v1398 = vshrl.u32 %v1397, 7
    %v1399 = vsub.s32 %v1396, %v1398
    %v1400 = vrot.slane %v1392, %v1399
    %v1402 = vunpack.c.l.s4 1983009808
    %v1403 = vunpack.c.0.s8 %v1402
    %v1404 = vlaneseq
    %v1405 = vshrl.u32 %v1404, 7
    %v1406 = vsub.s32 %v1403, %v1405
    %v1407 = vrot.slane %v1393, %v1406
    %v1408 = vcombine.low %v1384, %v1400
    %v1409 = vcombine.high %v1384, %v1400
    %v1411 = vunpack.c.l.s4 1934713408
    %v1412 = vunpack.c.0.s8 %v1411
    %v1413 = vlaneseq
    %v1414 = vshrl.u32 %v1413, 7
    %v1415 = vsub.s32 %v1412, %v1414
    %v1416 = vrot.slane %v1408, %v1415
    %v1418 = vunpack.c.l.s4 1934713408
    %v1419 = vunpack.c.0.s8 %v1418
    %v1420 = vlaneseq
    %v1421 = vshrl.u32 %v1420, 7
    %v1422 = vsub.s32 %v1419, %v1421
    %v1423 = vrot.slane %v1409, %v1422
    %v1424 = vcombine.low %v1391, %v1407
    %v1425 = vcombine.high %v1391, %v1407
    %v1427 = vunpack.c.l.s4 1934713408
    %v1428 = vunpack.c.0.s8 %v1427
    %v1429 = vlaneseq
    %v1430 = vshrl.u32 %v1429, 7
    %v1431 = vsub.s32 %v1428, %v1430
    %v1432 = vrot.slane %v1424, %v1431
    %v1434 = vunpack.c.l.s4 1934713408
    %v1435 = vunpack.c.0.s8 %v1434
    %v1436 = vlaneseq
    %v1437 = vshrl.u32 %v1436, 7
    %v1438 = vsub.s32 %v1435, %v1437
    %v1439 = vrot.slane %v1425, %v1438
    %v1440 = vcombine.high %v1416, 0.0
    %v1441 = vcombine.high %v1423, 0.0
    %v1442 = vcombine.high %v1432, 0.0
    %v1443 = vcombine.high %v1439, 0.0
    %v1444 = vcombine.low %v1416, %v1423
    %v1446 = vunpack.c.l.s4 1983009808
    %v1447 = vunpack.c.0.s8 %v1446
    %v1448 = vlaneseq
    %v1449 = vshrl.u32 %v1448, 7
    %v1450 = vsub.s32 %v1447, %v1449
    %v1451 = vrot.slane %v1444, %v1450
    %v1452 = vcombine.low %v1440, %v1441
    %v1454 = vunpack.c.l.s4 1983009808
    %v1455 = vunpack.c.0.s8 %v1454
    %v1456 = vlaneseq
    %v1457 = vshrl.u32 %v1456, 7
    %v1458 = vsub.s32 %v1455, %v1457
    %v1459 = vrot.slane %v1452, %v1458
    %v1460 = vcombine.low %v1432, %v1439
    %v1462 = vunpack.c.l.s4 1983009808
    %v1463 = vunpack.c.0.s8 %v1462
    %v1464 = vlaneseq
    %v1465 = vshrl.u32 %v1464, 7
    %v1466 = vsub.s32 %v1463, %v1465
    %v1467 = vrot.slane %v1460, %v1466
    %v1468 = vcombine.low %v1442, %v1443
    %v1470 = vunpack.c.l.s4 1983009808
    %v1471 = vunpack.c.0.s8 %v1470
    %v1472 = vlaneseq
    %v1473 = vshrl.u32 %v1472, 7
    %v1474 = vsub.s32 %v1471, %v1473
    %v1475 = vrot.slane %v1468, %v1474
    %v1476 = vcombine.low %v1451, %v1459
    %v1477 = vcombine.high %v1451, %v1459
    %v1479 = vunpack.c.l.s4 1934713408
    %v1480 = vunpack.c.0.s8 %v1479
    %v1481 = vlaneseq
    %v1482 = vshrl.u32 %v1481, 7
    %v1483 = vsub.s32 %v1480, %v1482
    %v1484 = vrot.slane %v1476, %v1483
    %v1486 = vunpack.c.l.s4 1934713408
    %v1487 = vunpack.c.0.s8 %v1486
    %v1488 = vlaneseq
    %v1489 = vshrl.u32 %v1488, 7
    %v1490 = vsub.s32 %v1487, %v1489
    %v1491 = vrot.slane %v1477, %v1490
    %v1492 = vcombine.low %v1467, %v1475
    %v1493 = vcombine.high %v1467, %v1475
    %v1495 = vunpack.c.l.s4 1934713408
    %v1496 = vunpack.c.0.s8 %v1495
    %v1497 = vlaneseq
    %v1498 = vshrl.u32 %v1497, 7
    %v1499 = vsub.s32 %v1496, %v1498
    %v1500 = vrot.slane %v1492, %v1499
    %v1502 = vunpack.c.l.s4 1934713408
    %v1503 = vunpack.c.0.s8 %v1502
    %v1504 = vlaneseq
    %v1505 = vshrl.u32 %v1504, 7
    %v1506 = vsub.s32 %v1503, %v1505
    %v1507 = vrot.slane %v1493, %v1506
    %v1508 = vcombine.low %v1484, %v1500
    %v1509 = vcombine.high %v1484, %v1500
    %v1510 = vcombine.low %v1491, %v1507
    %v1511 = vcombine.high %v1491, %v1507
    %v1512 = vpack.c.bf16 %v1508, %v1508
    %v1513 = vpack.c.bf16 %v1509, %v1509
    %v1514 = vpack.c.bf16 %v1510, %v1510
    %v1515 = vpack.c.bf16 %v1511, %v1511
    %1517 = vrot.lane.b32.xlu0 %v221, 120
    %v1518 = vpop.permute.xlu0 %1517
    %1520 = vrot.lane.b32.xlu0 %v221, 112
    %v1521 = vpop.permute.xlu0 %1520
    %1523 = vrot.lane.b32.xlu0 %v221, 104
    %v1524 = vpop.permute.xlu0 %1523
    %v1526 = vcombine.low %v221, %v1521
    %v1527 = vcombine.high %v221, %v1521
    %v1529 = vunpack.c.l.s4 1983009808
    %v1530 = vunpack.c.0.s8 %v1529
    %v1531 = vlaneseq
    %v1532 = vshrl.u32 %v1531, 7
    %v1533 = vsub.s32 %v1530, %v1532
    %v1534 = vrot.slane %v1526, %v1533
    %v1536 = vunpack.c.l.s4 1983009808
    %v1537 = vunpack.c.0.s8 %v1536
    %v1538 = vlaneseq
    %v1539 = vshrl.u32 %v1538, 7
    %v1540 = vsub.s32 %v1537, %v1539
    %v1541 = vrot.slane %v1527, %v1540
    %v1542 = vcombine.low %v1518, %v1524
    %v1543 = vcombine.high %v1518, %v1524
    %v1545 = vunpack.c.l.s4 1983009808
    %v1546 = vunpack.c.0.s8 %v1545
    %v1547 = vlaneseq
    %v1548 = vshrl.u32 %v1547, 7
    %v1549 = vsub.s32 %v1546, %v1548
    %v1550 = vrot.slane %v1542, %v1549
    %v1552 = vunpack.c.l.s4 1983009808
    %v1553 = vunpack.c.0.s8 %v1552
    %v1554 = vlaneseq
    %v1555 = vshrl.u32 %v1554, 7
    %v1556 = vsub.s32 %v1553, %v1555
    %v1557 = vrot.slane %v1543, %v1556
    %v1558 = vcombine.low %v1534, %v1550
    %v1559 = vcombine.high %v1534, %v1550
    %v1561 = vunpack.c.l.s4 1934713408
    %v1562 = vunpack.c.0.s8 %v1561
    %v1563 = vlaneseq
    %v1564 = vshrl.u32 %v1563, 7
    %v1565 = vsub.s32 %v1562, %v1564
    %v1566 = vrot.slane %v1558, %v1565
    %v1568 = vunpack.c.l.s4 1934713408
    %v1569 = vunpack.c.0.s8 %v1568
    %v1570 = vlaneseq
    %v1571 = vshrl.u32 %v1570, 7
    %v1572 = vsub.s32 %v1569, %v1571
    %v1573 = vrot.slane %v1559, %v1572
    %v1574 = vcombine.low %v1541, %v1557
    %v1575 = vcombine.high %v1541, %v1557
    %v1577 = vunpack.c.l.s4 1934713408
    %v1578 = vunpack.c.0.s8 %v1577
    %v1579 = vlaneseq
    %v1580 = vshrl.u32 %v1579, 7
    %v1581 = vsub.s32 %v1578, %v1580
    %v1582 = vrot.slane %v1574, %v1581
    %v1584 = vunpack.c.l.s4 1934713408
    %v1585 = vunpack.c.0.s8 %v1584
    %v1586 = vlaneseq
    %v1587 = vshrl.u32 %v1586, 7
    %v1588 = vsub.s32 %v1585, %v1587
    %v1589 = vrot.slane %v1575, %v1588
    %v1590 = vcombine.high %v1566, 0.0
    %v1591 = vcombine.high %v1573, 0.0
    %v1592 = vcombine.high %v1582, 0.0
    %v1593 = vcombine.high %v1589, 0.0
    %v1594 = vcombine.low %v1566, %v1573
    %v1596 = vunpack.c.l.s4 1983009808
    %v1597 = vunpack.c.0.s8 %v1596
    %v1598 = vlaneseq
    %v1599 = vshrl.u32 %v1598, 7
    %v1600 = vsub.s32 %v1597, %v1599
    %v1601 = vrot.slane %v1594, %v1600
    %v1602 = vcombine.low %v1590, %v1591
    %v1604 = vunpack.c.l.s4 1983009808
    %v1605 = vunpack.c.0.s8 %v1604
    %v1606 = vlaneseq
    %v1607 = vshrl.u32 %v1606, 7
    %v1608 = vsub.s32 %v1605, %v1607
    %v1609 = vrot.slane %v1602, %v1608
    %v1610 = vcombine.low %v1582, %v1589
    %v1612 = vunpack.c.l.s4 1983009808
    %v1613 = vunpack.c.0.s8 %v1612
    %v1614 = vlaneseq
    %v1615 = vshrl.u32 %v1614, 7
    %v1616 = vsub.s32 %v1613, %v1615
    %v1617 = vrot.slane %v1610, %v1616
    %v1618 = vcombine.low %v1592, %v1593
    %v1620 = vunpack.c.l.s4 1983009808
    %v1621 = vunpack.c.0.s8 %v1620
    %v1622 = vlaneseq
    %v1623 = vshrl.u32 %v1622, 7
    %v1624 = vsub.s32 %v1621, %v1623
    %v1625 = vrot.slane %v1618, %v1624
    %v1626 = vcombine.low %v1601, %v1609
    %v1627 = vcombine.high %v1601, %v1609
    %v1629 = vunpack.c.l.s4 1934713408
    %v1630 = vunpack.c.0.s8 %v1629
    %v1631 = vlaneseq
    %v1632 = vshrl.u32 %v1631, 7
    %v1633 = vsub.s32 %v1630, %v1632
    %v1634 = vrot.slane %v1626, %v1633
    %v1636 = vunpack.c.l.s4 1934713408
    %v1637 = vunpack.c.0.s8 %v1636
    %v1638 = vlaneseq
    %v1639 = vshrl.u32 %v1638, 7
    %v1640 = vsub.s32 %v1637, %v1639
    %v1641 = vrot.slane %v1627, %v1640
    %v1642 = vcombine.low %v1617, %v1625
    %v1643 = vcombine.high %v1617, %v1625
    %v1645 = vunpack.c.l.s4 1934713408
    %v1646 = vunpack.c.0.s8 %v1645
    %v1647 = vlaneseq
    %v1648 = vshrl.u32 %v1647, 7
    %v1649 = vsub.s32 %v1646, %v1648
    %v1650 = vrot.slane %v1642, %v1649
    %v1652 = vunpack.c.l.s4 1934713408
    %v1653 = vunpack.c.0.s8 %v1652
    %v1654 = vlaneseq
    %v1655 = vshrl.u32 %v1654, 7
    %v1656 = vsub.s32 %v1653, %v1655
    %v1657 = vrot.slane %v1643, %v1656
    %v1658 = vcombine.low %v1634, %v1650
    %v1659 = vcombine.high %v1634, %v1650
    %v1660 = vcombine.low %v1641, %v1657
    %v1661 = vcombine.high %v1641, %v1657
    %v1662 = vpack.c.bf16 %v1658, %v1658
    %v1663 = vpack.c.bf16 %v1659, %v1659
    %v1664 = vpack.c.bf16 %v1660, %v1660
    %v1665 = vpack.c.bf16 %v1661, %v1661
    %1667 = vrot.lane.b32.xlu0 %v285, 120
    %v1668 = vpop.permute.xlu0 %1667
    %1670 = vrot.lane.b32.xlu0 %v285, 112
    %v1671 = vpop.permute.xlu0 %1670
    %1673 = vrot.lane.b32.xlu0 %v285, 104
    %v1674 = vpop.permute.xlu0 %1673
    %v1676 = vcombine.low %v285, %v1671
    %v1677 = vcombine.high %v285, %v1671
    %v1679 = vunpack.c.l.s4 1983009808
    %v1680 = vunpack.c.0.s8 %v1679
    %v1681 = vlaneseq
    %v1682 = vshrl.u32 %v1681, 7
    %v1683 = vsub.s32 %v1680, %v1682
    %v1684 = vrot.slane %v1676, %v1683
    %v1686 = vunpack.c.l.s4 1983009808
    %v1687 = vunpack.c.0.s8 %v1686
    %v1688 = vlaneseq
    %v1689 = vshrl.u32 %v1688, 7
    %v1690 = vsub.s32 %v1687, %v1689
    %v1691 = vrot.slane %v1677, %v1690
    %v1692 = vcombine.low %v1668, %v1674
    %v1693 = vcombine.high %v1668, %v1674
    %v1695 = vunpack.c.l.s4 1983009808
    %v1696 = vunpack.c.0.s8 %v1695
    %v1697 = vlaneseq
    %v1698 = vshrl.u32 %v1697, 7
    %v1699 = vsub.s32 %v1696, %v1698
    %v1700 = vrot.slane %v1692, %v1699
    %v1702 = vunpack.c.l.s4 1983009808
    %v1703 = vunpack.c.0.s8 %v1702
    %v1704 = vlaneseq
    %v1705 = vshrl.u32 %v1704, 7
    %v1706 = vsub.s32 %v1703, %v1705
    %v1707 = vrot.slane %v1693, %v1706
    %v1708 = vcombine.low %v1684, %v1700
    %v1709 = vcombine.high %v1684, %v1700
    %v1711 = vunpack.c.l.s4 1934713408
    %v1712 = vunpack.c.0.s8 %v1711
    %v1713 = vlaneseq
    %v1714 = vshrl.u32 %v1713, 7
    %v1715 = vsub.s32 %v1712, %v1714
    %v1716 = vrot.slane %v1708, %v1715
    %v1718 = vunpack.c.l.s4 1934713408
    %v1719 = vunpack.c.0.s8 %v1718
    %v1720 = vlaneseq
    %v1721 = vshrl.u32 %v1720, 7
    %v1722 = vsub.s32 %v1719, %v1721
    %v1723 = vrot.slane %v1709, %v1722
    %v1724 = vcombine.low %v1691, %v1707
    %v1725 = vcombine.high %v1691, %v1707
    %v1727 = vunpack.c.l.s4 1934713408
    %v1728 = vunpack.c.0.s8 %v1727
    %v1729 = vlaneseq
    %v1730 = vshrl.u32 %v1729, 7
    %v1731 = vsub.s32 %v1728, %v1730
    %v1732 = vrot.slane %v1724, %v1731
    %v1734 = vunpack.c.l.s4 1934713408
    %v1735 = vunpack.c.0.s8 %v1734
    %v1736 = vlaneseq
    %v1737 = vshrl.u32 %v1736, 7
    %v1738 = vsub.s32 %v1735, %v1737
    %v1739 = vrot.slane %v1725, %v1738
    %v1740 = vcombine.high %v1716, 0.0
    %v1741 = vcombine.high %v1723, 0.0
    %v1742 = vcombine.high %v1732, 0.0
    %v1743 = vcombine.high %v1739, 0.0
    %v1744 = vcombine.low %v1716, %v1723
    %v1746 = vunpack.c.l.s4 1983009808
    %v1747 = vunpack.c.0.s8 %v1746
    %v1748 = vlaneseq
    %v1749 = vshrl.u32 %v1748, 7
    %v1750 = vsub.s32 %v1747, %v1749
    %v1751 = vrot.slane %v1744, %v1750
    %v1752 = vcombine.low %v1740, %v1741
    %v1754 = vunpack.c.l.s4 1983009808
    %v1755 = vunpack.c.0.s8 %v1754
    %v1756 = vlaneseq
    %v1757 = vshrl.u32 %v1756, 7
    %v1758 = vsub.s32 %v1755, %v1757
    %v1759 = vrot.slane %v1752, %v1758
    %v1760 = vcombine.low %v1732, %v1739
    %v1762 = vunpack.c.l.s4 1983009808
    %v1763 = vunpack.c.0.s8 %v1762
    %v1764 = vlaneseq
    %v1765 = vshrl.u32 %v1764, 7
    %v1766 = vsub.s32 %v1763, %v1765
    %v1767 = vrot.slane %v1760, %v1766
    %v1768 = vcombine.low %v1742, %v1743
    %v1770 = vunpack.c.l.s4 1983009808
    %v1771 = vunpack.c.0.s8 %v1770
    %v1772 = vlaneseq
    %v1773 = vshrl.u32 %v1772, 7
    %v1774 = vsub.s32 %v1771, %v1773
    %v1775 = vrot.slane %v1768, %v1774
    %v1776 = vcombine.low %v1751, %v1759
    %v1777 = vcombine.high %v1751, %v1759
    %v1779 = vunpack.c.l.s4 1934713408
    %v1780 = vunpack.c.0.s8 %v1779
    %v1781 = vlaneseq
    %v1782 = vshrl.u32 %v1781, 7
    %v1783 = vsub.s32 %v1780, %v1782
    %v1784 = vrot.slane %v1776, %v1783
    %v1786 = vunpack.c.l.s4 1934713408
    %v1787 = vunpack.c.0.s8 %v1786
    %v1788 = vlaneseq
    %v1789 = vshrl.u32 %v1788, 7
    %v1790 = vsub.s32 %v1787, %v1789
    %v1791 = vrot.slane %v1777, %v1790
    %v1792 = vcombine.low %v1767, %v1775
    %v1793 = vcombine.high %v1767, %v1775
    %v1795 = vunpack.c.l.s4 1934713408
    %v1796 = vunpack.c.0.s8 %v1795
    %v1797 = vlaneseq
    %v1798 = vshrl.u32 %v1797, 7
    %v1799 = vsub.s32 %v1796, %v1798
    %v1800 = vrot.slane %v1792, %v1799
    %v1802 = vunpack.c.l.s4 1934713408
    %v1803 = vunpack.c.0.s8 %v1802
    %v1804 = vlaneseq
    %v1805 = vshrl.u32 %v1804, 7
    %v1806 = vsub.s32 %v1803, %v1805
    %v1807 = vrot.slane %v1793, %v1806
    %v1808 = vcombine.low %v1784, %v1800
    %v1809 = vcombine.high %v1784, %v1800
    %v1810 = vcombine.low %v1791, %v1807
    %v1811 = vcombine.high %v1791, %v1807
    %v1812 = vpack.c.bf16 %v1808, %v1808
    %v1813 = vpack.c.bf16 %v1809, %v1809
    %v1814 = vpack.c.bf16 %v1810, %v1810
    %v1815 = vpack.c.bf16 %v1811, %v1811
    %v1817 = vsel %vm745, %v1512, 0
    %v1820 = vsel %vm745, %v1662, 0
    %1822 = vmatprep.subr.bf16.mxu0 0
    %1823 = vmatpush1.bf16.xpose.msra.mxu0 %v1820
    %1824 = vmatprep.subr.bf16.mxu0 0
    %1825 = vmatpush1.bf16.xpose.msra.mxu0 0
    %1826 = vmatprep.subr.bf16.mxu0 0
    %1827 = vmatpush1.bf16.xpose.msra.mxu0 0
    %1828 = vmatprep.subr.bf16.mxu0 0
    %1829 = vmatpush1.bf16.xpose.msra.mxu0 0
    %1830 = vmatprep.subr.bf16.mxu0 0
    %1831 = vmatpush1.bf16.xpose.msra.mxu0 0
    %1832 = vmatprep.subr.bf16.mxu0 0
    %1833 = vmatpush1.bf16.xpose.msra.mxu0 0
    %1834 = vmatprep.subr.bf16.mxu0 0
    %1835 = vmatpush1.bf16.xpose.msra.mxu0 0
    %1836 = vmatprep.subr.bf16.mxu0 0
    %1837 = vmatpush1.bf16.xpose.msra.mxu0 0
    %1838 = vmatprep.subr.bf16.mxu0 0
    %1839 = vmatpush1.bf16.xpose.msra.mxu0 0
    %1840 = vmatprep.subr.bf16.mxu0 0
    %1841 = vmatpush1.bf16.xpose.msra.mxu0 0
    %1842 = vmatprep.subr.bf16.mxu0 0
    %1843 = vmatpush1.bf16.xpose.msra.mxu0 0
    %1844 = vmatprep.subr.bf16.mxu0 0
    %1845 = vmatpush1.bf16.xpose.msra.mxu0 0
    %1846 = vmatprep.subr.bf16.mxu0 0
    %1847 = vmatpush1.bf16.xpose.msra.mxu0 0
    %1848 = vmatprep.subr.bf16.mxu0 0
    %1849 = vmatpush1.bf16.xpose.msra.mxu0 0
    %1850 = vmatprep.subr.bf16.mxu0 0
    %1851 = vmatpush1.bf16.xpose.msra.mxu0 0
    %1852 = vmatprep.subr.bf16.mxu0 0
    %1853 = vmatpush1.bf16.xpose.msra.mxu0 0
    %1854 = vmatprep.mubr.bf16.mxu0 0
    %1855 = vmatmul.mubr.bf16.gmra.mrb[0].mxu0 %v1817
    %v1856 = vpop.f32.mrb[0].mxu0
    %v1857 = vadd.f32 0.0, %v1856
    %v1858 = vpop.f32.mrb[0].mxu0
    %v1859 = vpop.f32.mrb[0].mxu0
    %v1860 = vpop.f32.mrb[0].mxu0
    %1861 = vdwg.mxu0
    %v1863 = vsel %vm745, %v1513, 0
    %v1866 = vsel %vm745, %v1663, 0
    %1868 = vmatprep.subr.bf16.mxu0 0
    %1869 = vmatpush1.bf16.xpose.msra.mxu0 %v1866
    %1870 = vmatprep.subr.bf16.mxu0 0
    %1871 = vmatpush1.bf16.xpose.msra.mxu0 0
    %1872 = vmatprep.subr.bf16.mxu0 0
    %1873 = vmatpush1.bf16.xpose.msra.mxu0 0
    %1874 = vmatprep.subr.bf16.mxu0 0
    %1875 = vmatpush1.bf16.xpose.msra.mxu0 0
    %1876 = vmatprep.subr.bf16.mxu0 0
    %1877 = vmatpush1.bf16.xpose.msra.mxu0 0
    %1878 = vmatprep.subr.bf16.mxu0 0
    %1879 = vmatpush1.bf16.xpose.msra.mxu0 0
    %1880 = vmatprep.subr.bf16.mxu0 0
    %1881 = vmatpush1.bf16.xpose.msra.mxu0 0
    %1882 = vmatprep.subr.bf16.mxu0 0
    %1883 = vmatpush1.bf16.xpose.msra.mxu0 0
    %1884 = vmatprep.subr.bf16.mxu0 0
    %1885 = vmatpush1.bf16.xpose.msra.mxu0 0
    %1886 = vmatprep.subr.bf16.mxu0 0
    %1887 = vmatpush1.bf16.xpose.msra.mxu0 0
    %1888 = vmatprep.subr.bf16.mxu0 0
    %1889 = vmatpush1.bf16.xpose.msra.mxu0 0
    %1890 = vmatprep.subr.bf16.mxu0 0
    %1891 = vmatpush1.bf16.xpose.msra.mxu0 0
    %1892 = vmatprep.subr.bf16.mxu0 0
    %1893 = vmatpush1.bf16.xpose.msra.mxu0 0
    %1894 = vmatprep.subr.bf16.mxu0 0
    %1895 = vmatpush1.bf16.xpose.msra.mxu0 0
    %1896 = vmatprep.subr.bf16.mxu0 0
    %1897 = vmatpush1.bf16.xpose.msra.mxu0 0
    %1898 = vmatprep.subr.bf16.mxu0 0
    %1899 = vmatpush1.bf16.xpose.msra.mxu0 0
    %1900 = vmatprep.mubr.bf16.mxu0 0
    %1901 = vmatmul.mubr.bf16.gmra.mrb[0].mxu0 %v1863
    %v1902 = vpop.f32.mrb[0].mxu0
    %v1903 = vadd.f32 0.0, %v1902
    %v1904 = vpop.f32.mrb[0].mxu0
    %v1905 = vpop.f32.mrb[0].mxu0
    %v1906 = vpop.f32.mrb[0].mxu0
    %1907 = vdwg.mxu0
    %v1909 = vsel %vm745, %v1514, 0
    %v1912 = vsel %vm745, %v1664, 0
    %1914 = vmatprep.subr.bf16.mxu0 0
    %1915 = vmatpush1.bf16.xpose.msra.mxu0 %v1912
    %1916 = vmatprep.subr.bf16.mxu0 0
    %1917 = vmatpush1.bf16.xpose.msra.mxu0 0
    %1918 = vmatprep.subr.bf16.mxu0 0
    %1919 = vmatpush1.bf16.xpose.msra.mxu0 0
    %1920 = vmatprep.subr.bf16.mxu0 0
    %1921 = vmatpush1.bf16.xpose.msra.mxu0 0
    %1922 = vmatprep.subr.bf16.mxu0 0
    %1923 = vmatpush1.bf16.xpose.msra.mxu0 0
    %1924 = vmatprep.subr.bf16.mxu0 0
    %1925 = vmatpush1.bf16.xpose.msra.mxu0 0
    %1926 = vmatprep.subr.bf16.mxu0 0
    %1927 = vmatpush1.bf16.xpose.msra.mxu0 0
    %1928 = vmatprep.subr.bf16.mxu0 0
    %1929 = vmatpush1.bf16.xpose.msra.mxu0 0
    %1930 = vmatprep.subr.bf16.mxu0 0
    %1931 = vmatpush1.bf16.xpose.msra.mxu0 0
    %1932 = vmatprep.subr.bf16.mxu0 0
    %1933 = vmatpush1.bf16.xpose.msra.mxu0 0
    %1934 = vmatprep.subr.bf16.mxu0 0
    %1935 = vmatpush1.bf16.xpose.msra.mxu0 0
    %1936 = vmatprep.subr.bf16.mxu0 0
    %1937 = vmatpush1.bf16.xpose.msra.mxu0 0
    %1938 = vmatprep.subr.bf16.mxu0 0
    %1939 = vmatpush1.bf16.xpose.msra.mxu0 0
    %1940 = vmatprep.subr.bf16.mxu0 0
    %1941 = vmatpush1.bf16.xpose.msra.mxu0 0
    %1942 = vmatprep.subr.bf16.mxu0 0
    %1943 = vmatpush1.bf16.xpose.msra.mxu0 0
    %1944 = vmatprep.subr.bf16.mxu0 0
    %1945 = vmatpush1.bf16.xpose.msra.mxu0 0
    %1946 = vmatprep.mubr.bf16.mxu0 0
    %1947 = vmatmul.mubr.bf16.gmra.mrb[0].mxu0 %v1909
    %v1948 = vpop.f32.mrb[0].mxu0
    %v1949 = vadd.f32 0.0, %v1948
    %v1950 = vpop.f32.mrb[0].mxu0
    %v1951 = vpop.f32.mrb[0].mxu0
    %v1952 = vpop.f32.mrb[0].mxu0
    %1953 = vdwg.mxu0
    %v1955 = vsel %vm745, %v1515, 0
    %v1958 = vsel %vm745, %v1665, 0
    %1960 = vmatprep.subr.bf16.mxu0 0
    %1961 = vmatpush1.bf16.xpose.msra.mxu0 %v1958
    %1962 = vmatprep.subr.bf16.mxu0 0
    %1963 = vmatpush1.bf16.xpose.msra.mxu0 0
    %1964 = vmatprep.subr.bf16.mxu0 0
    %1965 = vmatpush1.bf16.xpose.msra.mxu0 0
    %1966 = vmatprep.subr.bf16.mxu0 0
    %1967 = vmatpush1.bf16.xpose.msra.mxu0 0
    %1968 = vmatprep.subr.bf16.mxu0 0
    %1969 = vmatpush1.bf16.xpose.msra.mxu0 0
    %1970 = vmatprep.subr.bf16.mxu0 0
    %1971 = vmatpush1.bf16.xpose.msra.mxu0 0
    %1972 = vmatprep.subr.bf16.mxu0 0
    %1973 = vmatpush1.bf16.xpose.msra.mxu0 0
    %1974 = vmatprep.subr.bf16.mxu0 0
    %1975 = vmatpush1.bf16.xpose.msra.mxu0 0
    %1976 = vmatprep.subr.bf16.mxu0 0
    %1977 = vmatpush1.bf16.xpose.msra.mxu0 0
    %1978 = vmatprep.subr.bf16.mxu0 0
    %1979 = vmatpush1.bf16.xpose.msra.mxu0 0
    %1980 = vmatprep.subr.bf16.mxu0 0
    %1981 = vmatpush1.bf16.xpose.msra.mxu0 0
    %1982 = vmatprep.subr.bf16.mxu0 0
    %1983 = vmatpush1.bf16.xpose.msra.mxu0 0
    %1984 = vmatprep.subr.bf16.mxu0 0
    %1985 = vmatpush1.bf16.xpose.msra.mxu0 0
    %1986 = vmatprep.subr.bf16.mxu0 0
    %1987 = vmatpush1.bf16.xpose.msra.mxu0 0
    %1988 = vmatprep.subr.bf16.mxu0 0
    %1989 = vmatpush1.bf16.xpose.msra.mxu0 0
    %1990 = vmatprep.subr.bf16.mxu0 0
    %1991 = vmatpush1.bf16.xpose.msra.mxu0 0
    %1992 = vmatprep.mubr.bf16.mxu0 0
    %1993 = vmatmul.mubr.bf16.gmra.mrb[0].mxu0 %v1955
    %v1994 = vpop.f32.mrb[0].mxu0
    %v1995 = vadd.f32 0.0, %v1994
    %v1996 = vpop.f32.mrb[0].mxu0
    %v1997 = vpop.f32.mrb[0].mxu0
    %v1998 = vpop.f32.mrb[0].mxu0
    %1999 = vdwg.mxu0
    %v2000 = vsel %vm745, %v1857, -inf
    %2001 = vmax.xlane.f32.xlu0 %v2000
    %v2002 = vpop.xlane.xlu0 %2001
    %v2003 = vsel %vm745, %v1903, -inf
    %2004 = vmax.xlane.f32.xlu0 %v2003
    %v2005 = vpop.xlane.xlu0 %2004
    %v2006 = vsel %vm745, %v1949, -inf
    %2007 = vmax.xlane.f32.xlu0 %v2006
    %v2008 = vpop.xlane.xlu0 %2007
    %v2009 = vsel %vm745, %v1995, -inf
    %2010 = vmax.xlane.f32.xlu0 %v2009
    %v2011 = vpop.xlane.xlu0 %2010
    %v2012 = vsub.f32 %v1857, %v2002
    %v2013 = vsub.f32 %v1903, %v2005
    %v2014 = vsub.f32 %v1949, %v2008
    %v2015 = vsub.f32 %v1995, %v2011
    %v2016 = vmul.f32 %v2012, 1.442695
    %v2017 = vpow.pop %v2016
    %v2018 = vmul.f32 %v2013, 1.442695
    %v2019 = vpow.pop %v2018
    %v2020 = vmul.f32 %v2014, 1.442695
    %v2021 = vpow.pop %v2020
    %v2022 = vmul.f32 %v2015, 1.442695
    %v2023 = vpow.pop %v2022
    %v2024 = vsel %vm745, %v2017, 0.0
    %2025 = vadd.xlane.f32.xlu0 %v2024
    %v2026 = vpop.xlane.xlu0 %2025
    %v2027 = vsel %vm745, %v2019, 0.0
    %2028 = vadd.xlane.f32.xlu0 %v2027
    %v2029 = vpop.xlane.xlu0 %2028
    %v2030 = vsel %vm745, %v2021, 0.0
    %2031 = vadd.xlane.f32.xlu0 %v2030
    %v2032 = vpop.xlane.xlu0 %2031
    %v2033 = vsel %vm745, %v2023, 0.0
    %2034 = vadd.xlane.f32.xlu0 %v2033
    %v2035 = vpop.xlane.xlu0 %2034
    %v2036 = vrcp.pop %v2026
    %v2037 = vrcp.pop %v2029
    %v2038 = vrcp.pop %v2032
    %v2039 = vrcp.pop %v2035
    %v2040 = vmul.f32 %v2017, %v2036
    %v2041 = vmul.f32 %v2019, %v2037
    %v2042 = vmul.f32 %v2021, %v2038
    %v2043 = vmul.f32 %v2023, %v2039
    %v2044 = vpack.c.bf16 %v2040, %v2040
    %v2045 = vpack.c.bf16 %v2041, %v2041
    %v2046 = vpack.c.bf16 %v2042, %v2042
    %v2047 = vpack.c.bf16 %v2043, %v2043
    %v2049 = vsel %vm745, %v2044, 0
    %v2052 = vsel %vm981, %v1812, 0
    %2054 = vmatprep.subr.bf16.mxu0 0
    %2055 = vmatpush1.bf16.msra.mxu0 %v2052
    %2056 = vmatprep.subr.bf16.mxu0 0
    %2057 = vmatpush1.bf16.msra.mxu0 0
    %2058 = vmatprep.subr.bf16.mxu0 0
    %2059 = vmatpush1.bf16.msra.mxu0 0
    %2060 = vmatprep.subr.bf16.mxu0 0
    %2061 = vmatpush1.bf16.msra.mxu0 0
    %2062 = vmatprep.subr.bf16.mxu0 0
    %2063 = vmatpush1.bf16.msra.mxu0 0
    %2064 = vmatprep.subr.bf16.mxu0 0
    %2065 = vmatpush1.bf16.msra.mxu0 0
    %2066 = vmatprep.subr.bf16.mxu0 0
    %2067 = vmatpush1.bf16.msra.mxu0 0
    %2068 = vmatprep.subr.bf16.mxu0 0
    %2069 = vmatpush1.bf16.msra.mxu0 0
    %2070 = vmatprep.subr.bf16.mxu0 0
    %2071 = vmatpush1.bf16.msra.mxu0 0
    %2072 = vmatprep.subr.bf16.mxu0 0
    %2073 = vmatpush1.bf16.msra.mxu0 0
    %2074 = vmatprep.subr.bf16.mxu0 0
    %2075 = vmatpush1.bf16.msra.mxu0 0
    %2076 = vmatprep.subr.bf16.mxu0 0
    %2077 = vmatpush1.bf16.msra.mxu0 0
    %2078 = vmatprep.subr.bf16.mxu0 0
    %2079 = vmatpush1.bf16.msra.mxu0 0
    %2080 = vmatprep.subr.bf16.mxu0 0
    %2081 = vmatpush1.bf16.msra.mxu0 0
    %2082 = vmatprep.subr.bf16.mxu0 0
    %2083 = vmatpush1.bf16.msra.mxu0 0
    %2084 = vmatprep.subr.bf16.mxu0 0
    %2085 = vmatpush1.bf16.msra.mxu0 0
    %2086 = vmatprep.mubr.bf16.mxu0 0
    %2087 = vmatmul.mubr.bf16.gmra.mrb[0].mxu0 %v2049
    %v2088 = vpop.f32.mrb[0].mxu0
    %v2089 = vadd.f32 0.0, %v2088
    %v2090 = vpop.f32.mrb[0].mxu0
    %v2091 = vpop.f32.mrb[0].mxu0
    %v2092 = vpop.f32.mrb[0].mxu0
    %2093 = vdwg.mxu0
    %v2095 = vsel %vm745, %v2045, 0
    %v2098 = vsel %vm981, %v1813, 0
    %2100 = vmatprep.subr.bf16.mxu0 0
    %2101 = vmatpush1.bf16.msra.mxu0 %v2098
    %2102 = vmatprep.subr.bf16.mxu0 0
    %2103 = vmatpush1.bf16.msra.mxu0 0
    %2104 = vmatprep.subr.bf16.mxu0 0
    %2105 = vmatpush1.bf16.msra.mxu0 0
    %2106 = vmatprep.subr.bf16.mxu0 0
    %2107 = vmatpush1.bf16.msra.mxu0 0
    %2108 = vmatprep.subr.bf16.mxu0 0
    %2109 = vmatpush1.bf16.msra.mxu0 0
    %2110 = vmatprep.subr.bf16.mxu0 0
    %2111 = vmatpush1.bf16.msra.mxu0 0
    %2112 = vmatprep.subr.bf16.mxu0 0
    %2113 = vmatpush1.bf16.msra.mxu0 0
    %2114 = vmatprep.subr.bf16.mxu0 0
    %2115 = vmatpush1.bf16.msra.mxu0 0
    %2116 = vmatprep.subr.bf16.mxu0 0
    %2117 = vmatpush1.bf16.msra.mxu0 0
    %2118 = vmatprep.subr.bf16.mxu0 0
    %2119 = vmatpush1.bf16.msra.mxu0 0
    %2120 = vmatprep.subr.bf16.mxu0 0
    %2121 = vmatpush1.bf16.msra.mxu0 0
    %2122 = vmatprep.subr.bf16.mxu0 0
    %2123 = vmatpush1.bf16.msra.mxu0 0
    %2124 = vmatprep.subr.bf16.mxu0 0
    %2125 = vmatpush1.bf16.msra.mxu0 0
    %2126 = vmatprep.subr.bf16.mxu0 0
    %2127 = vmatpush1.bf16.msra.mxu0 0
    %2128 = vmatprep.subr.bf16.mxu0 0
    %2129 = vmatpush1.bf16.msra.mxu0 0
    %2130 = vmatprep.subr.bf16.mxu0 0
    %2131 = vmatpush1.bf16.msra.mxu0 0
    %2132 = vmatprep.mubr.bf16.mxu0 0
    %2133 = vmatmul.mubr.bf16.gmra.mrb[0].mxu0 %v2095
    %v2134 = vpop.f32.mrb[0].mxu0
    %v2135 = vadd.f32 0.0, %v2134
    %v2136 = vpop.f32.mrb[0].mxu0
    %v2137 = vpop.f32.mrb[0].mxu0
    %v2138 = vpop.f32.mrb[0].mxu0
    %2139 = vdwg.mxu0
    %v2141 = vsel %vm745, %v2046, 0
    %v2144 = vsel %vm981, %v1814, 0
    %2146 = vmatprep.subr.bf16.mxu0 0
    %2147 = vmatpush1.bf16.msra.mxu0 %v2144
    %2148 = vmatprep.subr.bf16.mxu0 0
    %2149 = vmatpush1.bf16.msra.mxu0 0
    %2150 = vmatprep.subr.bf16.mxu0 0
    %2151 = vmatpush1.bf16.msra.mxu0 0
    %2152 = vmatprep.subr.bf16.mxu0 0
    %2153 = vmatpush1.bf16.msra.mxu0 0
    %2154 = vmatprep.subr.bf16.mxu0 0
    %2155 = vmatpush1.bf16.msra.mxu0 0
    %2156 = vmatprep.subr.bf16.mxu0 0
    %2157 = vmatpush1.bf16.msra.mxu0 0
    %2158 = vmatprep.subr.bf16.mxu0 0
    %2159 = vmatpush1.bf16.msra.mxu0 0
    %2160 = vmatprep.subr.bf16.mxu0 0
    %2161 = vmatpush1.bf16.msra.mxu0 0
    %2162 = vmatprep.subr.bf16.mxu0 0
    %2163 = vmatpush1.bf16.msra.mxu0 0
    %2164 = vmatprep.subr.bf16.mxu0 0
    %2165 = vmatpush1.bf16.msra.mxu0 0
    %2166 = vmatprep.subr.bf16.mxu0 0
    %2167 = vmatpush1.bf16.msra.mxu0 0
    %2168 = vmatprep.subr.bf16.mxu0 0
    %2169 = vmatpush1.bf16.msra.mxu0 0
    %2170 = vmatprep.subr.bf16.mxu0 0
    %2171 = vmatpush1.bf16.msra.mxu0 0
    %2172 = vmatprep.subr.bf16.mxu0 0
    %2173 = vmatpush1.bf16.msra.mxu0 0
    %2174 = vmatprep.subr.bf16.mxu0 0
    %2175 = vmatpush1.bf16.msra.mxu0 0
    %2176 = vmatprep.subr.bf16.mxu0 0
    %2177 = vmatpush1.bf16.msra.mxu0 0
    %2178 = vmatprep.mubr.bf16.mxu0 0
    %2179 = vmatmul.mubr.bf16.gmra.mrb[0].mxu0 %v2141
    %v2180 = vpop.f32.mrb[0].mxu0
    %v2181 = vadd.f32 0.0, %v2180
    %v2182 = vpop.f32.mrb[0].mxu0
    %v2183 = vpop.f32.mrb[0].mxu0
    %v2184 = vpop.f32.mrb[0].mxu0
    %2185 = vdwg.mxu0
    %v2187 = vsel %vm745, %v2047, 0
    %v2190 = vsel %vm981, %v1815, 0
    %2192 = vmatprep.subr.bf16.mxu0 0
    %2193 = vmatpush1.bf16.msra.mxu0 %v2190
    %2194 = vmatprep.subr.bf16.mxu0 0
    %2195 = vmatpush1.bf16.msra.mxu0 0
    %2196 = vmatprep.subr.bf16.mxu0 0
    %2197 = vmatpush1.bf16.msra.mxu0 0
    %2198 = vmatprep.subr.bf16.mxu0 0
    %2199 = vmatpush1.bf16.msra.mxu0 0
    %2200 = vmatprep.subr.bf16.mxu0 0
    %2201 = vmatpush1.bf16.msra.mxu0 0
    %2202 = vmatprep.subr.bf16.mxu0 0
    %2203 = vmatpush1.bf16.msra.mxu0 0
    %2204 = vmatprep.subr.bf16.mxu0 0
    %2205 = vmatpush1.bf16.msra.mxu0 0
    %2206 = vmatprep.subr.bf16.mxu0 0
    %2207 = vmatpush1.bf16.msra.mxu0 0
    %2208 = vmatprep.subr.bf16.mxu0 0
    %2209 = vmatpush1.bf16.msra.mxu0 0
    %2210 = vmatprep.subr.bf16.mxu0 0
    %2211 = vmatpush1.bf16.msra.mxu0 0
    %2212 = vmatprep.subr.bf16.mxu0 0
    %2213 = vmatpush1.bf16.msra.mxu0 0
    %2214 = vmatprep.subr.bf16.mxu0 0
    %2215 = vmatpush1.bf16.msra.mxu0 0
    %2216 = vmatprep.subr.bf16.mxu0 0
    %2217 = vmatpush1.bf16.msra.mxu0 0
    %2218 = vmatprep.subr.bf16.mxu0 0
    %2219 = vmatpush1.bf16.msra.mxu0 0
    %2220 = vmatprep.subr.bf16.mxu0 0
    %2221 = vmatpush1.bf16.msra.mxu0 0
    %2222 = vmatprep.subr.bf16.mxu0 0
    %2223 = vmatpush1.bf16.msra.mxu0 0
    %2224 = vmatprep.mubr.bf16.mxu0 0
    %2225 = vmatmul.mubr.bf16.gmra.mrb[0].mxu0 %v2187
    %v2226 = vpop.f32.mrb[0].mxu0
    %v2227 = vadd.f32 0.0, %v2226
    %v2228 = vpop.f32.mrb[0].mxu0
    %v2229 = vpop.f32.mrb[0].mxu0
    %v2230 = vpop.f32.mrb[0].mxu0
    %2231 = vdwg.mxu0
    %v2232 = vpack.c.bf16 %v2089, %v2089
    %v2233 = vpack.c.bf16 %v2135, %v2135
    %v2234 = vpack.c.bf16 %v2181, %v2181
    %v2235 = vpack.c.bf16 %v2227, %v2227
    %v2237 = vsel %vm745, %v2232, 0
    %2239 = vmatprep.subr.bf16.mxu0 0
    %2240 = vmatpush1.bf16.msra.mxu0 %v1171
    %2241 = vmatprep.subr.bf16.mxu0 0
    %2242 = vmatpush1.bf16.msra.mxu0 0
    %2243 = vmatprep.subr.bf16.mxu0 0
    %2244 = vmatpush1.bf16.msra.mxu0 0
    %2245 = vmatprep.subr.bf16.mxu0 0
    %2246 = vmatpush1.bf16.msra.mxu0 0
    %2247 = vmatprep.subr.bf16.mxu0 0
    %2248 = vmatpush1.bf16.msra.mxu0 0
    %2249 = vmatprep.subr.bf16.mxu0 0
    %2250 = vmatpush1.bf16.msra.mxu0 0
    %2251 = vmatprep.subr.bf16.mxu0 0
    %2252 = vmatpush1.bf16.msra.mxu0 0
    %2253 = vmatprep.subr.bf16.mxu0 0
    %2254 = vmatpush1.bf16.msra.mxu0 0
    %2255 = vmatprep.subr.bf16.mxu0 0
    %2256 = vmatpush1.bf16.msra.mxu0 0
    %2257 = vmatprep.subr.bf16.mxu0 0
    %2258 = vmatpush1.bf16.msra.mxu0 0
    %2259 = vmatprep.subr.bf16.mxu0 0
    %2260 = vmatpush1.bf16.msra.mxu0 0
    %2261 = vmatprep.subr.bf16.mxu0 0
    %2262 = vmatpush1.bf16.msra.mxu0 0
    %2263 = vmatprep.subr.bf16.mxu0 0
    %2264 = vmatpush1.bf16.msra.mxu0 0
    %2265 = vmatprep.subr.bf16.mxu0 0
    %2266 = vmatpush1.bf16.msra.mxu0 0
    %2267 = vmatprep.subr.bf16.mxu0 0
    %2268 = vmatpush1.bf16.msra.mxu0 0
    %2269 = vmatprep.subr.bf16.mxu0 0
    %2270 = vmatpush1.bf16.msra.mxu0 0
    %2271 = vmatprep.mubr.bf16.mxu0 0
    %2272 = vmatmul.mubr.bf16.gmra.mrb[0].mxu0 %v2237
    %v2273 = vpop.f32.mrb[0].mxu0
    %v2274 = vadd.f32 0.0, %v2273
    %v2275 = vpop.f32.mrb[0].mxu0
    %v2276 = vpop.f32.mrb[0].mxu0
    %v2277 = vpop.f32.mrb[0].mxu0
    %2278 = vdwg.mxu0
    %v2280 = vsel %vm745, %v2233, 0
    %2282 = vmatprep.subr.bf16.mxu0 0
    %2283 = vmatpush1.bf16.msra.mxu0 %v1217
    %2284 = vmatprep.subr.bf16.mxu0 0
    %2285 = vmatpush1.bf16.msra.mxu0 0
    %2286 = vmatprep.subr.bf16.mxu0 0
    %2287 = vmatpush1.bf16.msra.mxu0 0
    %2288 = vmatprep.subr.bf16.mxu0 0
    %2289 = vmatpush1.bf16.msra.mxu0 0
    %2290 = vmatprep.subr.bf16.mxu0 0
    %2291 = vmatpush1.bf16.msra.mxu0 0
    %2292 = vmatprep.subr.bf16.mxu0 0
    %2293 = vmatpush1.bf16.msra.mxu0 0
    %2294 = vmatprep.subr.bf16.mxu0 0
    %2295 = vmatpush1.bf16.msra.mxu0 0
    %2296 = vmatprep.subr.bf16.mxu0 0
    %2297 = vmatpush1.bf16.msra.mxu0 0
    %2298 = vmatprep.subr.bf16.mxu0 0
    %2299 = vmatpush1.bf16.msra.mxu0 0
    %2300 = vmatprep.subr.bf16.mxu0 0
    %2301 = vmatpush1.bf16.msra.mxu0 0
    %2302 = vmatprep.subr.bf16.mxu0 0
    %2303 = vmatpush1.bf16.msra.mxu0 0
    %2304 = vmatprep.subr.bf16.mxu0 0
    %2305 = vmatpush1.bf16.msra.mxu0 0
    %2306 = vmatprep.subr.bf16.mxu0 0
    %2307 = vmatpush1.bf16.msra.mxu0 0
    %2308 = vmatprep.subr.bf16.mxu0 0
    %2309 = vmatpush1.bf16.msra.mxu0 0
    %2310 = vmatprep.subr.bf16.mxu0 0
    %2311 = vmatpush1.bf16.msra.mxu0 0
    %2312 = vmatprep.subr.bf16.mxu0 0
    %2313 = vmatpush1.bf16.msra.mxu0 0
    %2314 = vmatprep.mubr.bf16.mxu0 0
    %2315 = vmatmul.mubr.bf16.gmra.mrb[0].mxu0 %v2280
    %v2316 = vpop.f32.mrb[0].mxu0
    %v2317 = vadd.f32 0.0, %v2316
    %v2318 = vpop.f32.mrb[0].mxu0
    %v2319 = vpop.f32.mrb[0].mxu0
    %v2320 = vpop.f32.mrb[0].mxu0
    %2321 = vdwg.mxu0
    %v2323 = vsel %vm745, %v2234, 0
    %2325 = vmatprep.subr.bf16.mxu0 0
    %2326 = vmatpush1.bf16.msra.mxu0 %v1263
    %2327 = vmatprep.subr.bf16.mxu0 0
    %2328 = vmatpush1.bf16.msra.mxu0 0
    %2329 = vmatprep.subr.bf16.mxu0 0
    %2330 = vmatpush1.bf16.msra.mxu0 0
    %2331 = vmatprep.subr.bf16.mxu0 0
    %2332 = vmatpush1.bf16.msra.mxu0 0
    %2333 = vmatprep.subr.bf16.mxu0 0
    %2334 = vmatpush1.bf16.msra.mxu0 0
    %2335 = vmatprep.subr.bf16.mxu0 0
    %2336 = vmatpush1.bf16.msra.mxu0 0
    %2337 = vmatprep.subr.bf16.mxu0 0
    %2338 = vmatpush1.bf16.msra.mxu0 0
    %2339 = vmatprep.subr.bf16.mxu0 0
    %2340 = vmatpush1.bf16.msra.mxu0 0
    %2341 = vmatprep.subr.bf16.mxu0 0
    %2342 = vmatpush1.bf16.msra.mxu0 0
    %2343 = vmatprep.subr.bf16.mxu0 0
    %2344 = vmatpush1.bf16.msra.mxu0 0
    %2345 = vmatprep.subr.bf16.mxu0 0
    %2346 = vmatpush1.bf16.msra.mxu0 0
    %2347 = vmatprep.subr.bf16.mxu0 0
    %2348 = vmatpush1.bf16.msra.mxu0 0
    %2349 = vmatprep.subr.bf16.mxu0 0
    %2350 = vmatpush1.bf16.msra.mxu0 0
    %2351 = vmatprep.subr.bf16.mxu0 0
    %2352 = vmatpush1.bf16.msra.mxu0 0
    %2353 = vmatprep.subr.bf16.mxu0 0
    %2354 = vmatpush1.bf16.msra.mxu0 0
    %2355 = vmatprep.subr.bf16.mxu0 0
    %2356 = vmatpush1.bf16.msra.mxu0 0
    %2357 = vmatprep.mubr.bf16.mxu0 0
    %2358 = vmatmul.mubr.bf16.gmra.mrb[0].mxu0 %v2323
    %v2359 = vpop.f32.mrb[0].mxu0
    %v2360 = vadd.f32 0.0, %v2359
    %v2361 = vpop.f32.mrb[0].mxu0
    %v2362 = vpop.f32.mrb[0].mxu0
    %v2363 = vpop.f32.mrb[0].mxu0
    %2364 = vdwg.mxu0
    %v2366 = vsel %vm745, %v2235, 0
    %2368 = vmatprep.subr.bf16.mxu0 0
    %2369 = vmatpush1.bf16.msra.mxu0 %v1309
    %2370 = vmatprep.subr.bf16.mxu0 0
    %2371 = vmatpush1.bf16.msra.mxu0 0
    %2372 = vmatprep.subr.bf16.mxu0 0
    %2373 = vmatpush1.bf16.msra.mxu0 0
    %2374 = vmatprep.subr.bf16.mxu0 0
    %2375 = vmatpush1.bf16.msra.mxu0 0
    %2376 = vmatprep.subr.bf16.mxu0 0
    %2377 = vmatpush1.bf16.msra.mxu0 0
    %2378 = vmatprep.subr.bf16.mxu0 0
    %2379 = vmatpush1.bf16.msra.mxu0 0
    %2380 = vmatprep.subr.bf16.mxu0 0
    %2381 = vmatpush1.bf16.msra.mxu0 0
    %2382 = vmatprep.subr.bf16.mxu0 0
    %2383 = vmatpush1.bf16.msra.mxu0 0
    %2384 = vmatprep.subr.bf16.mxu0 0
    %2385 = vmatpush1.bf16.msra.mxu0 0
    %2386 = vmatprep.subr.bf16.mxu0 0
    %2387 = vmatpush1.bf16.msra.mxu0 0
    %2388 = vmatprep.subr.bf16.mxu0 0
    %2389 = vmatpush1.bf16.msra.mxu0 0
    %2390 = vmatprep.subr.bf16.mxu0 0
    %2391 = vmatpush1.bf16.msra.mxu0 0
    %2392 = vmatprep.subr.bf16.mxu0 0
    %2393 = vmatpush1.bf16.msra.mxu0 0
    %2394 = vmatprep.subr.bf16.mxu0 0
    %2395 = vmatpush1.bf16.msra.mxu0 0
    %2396 = vmatprep.subr.bf16.mxu0 0
    %2397 = vmatpush1.bf16.msra.mxu0 0
    %2398 = vmatprep.subr.bf16.mxu0 0
    %2399 = vmatpush1.bf16.msra.mxu0 0
    %2400 = vmatprep.mubr.bf16.mxu0 0
    %2401 = vmatmul.mubr.bf16.gmra.mrb[0].mxu0 %v2366
    %v2402 = vpop.f32.mrb[0].mxu0
    %v2403 = vadd.f32 0.0, %v2402
    %v2404 = vpop.f32.mrb[0].mxu0
    %v2405 = vpop.f32.mrb[0].mxu0
    %v2406 = vpop.f32.mrb[0].mxu0
    %2407 = vdwg.mxu0
    %v2408 = vsel %vm115, %v2274, 0.0
    %v2409 = vsel %vm115, %v2317, 0.0
    %v2410 = vadd.f32 %v2408, %v2409
    %v2411 = vsel %vm115, %v2360, 0.0
    %v2412 = vadd.f32 %v2410, %v2411
    %v2413 = vsel %vm115, %v2403, 0.0
    %v2414 = vadd.f32 %v2412, %v2413
    %v2415 = vadd.f32 %v2414, %v1362
    %2416 = vst.msk [vmem:[#allocation10 + $0x8] sm:$0xff] %vm115, %v2415
    // Predicated region
    $region54: #{tpu_custom_call.1} parent=1 // pred_check
      _
    $region55: #{tpu_custom_call.1} parent=1 // pred_check_branch
      %2418 = sbr.rel (0) target = $region57
    $region56: #{tpu_custom_call.1} parent=1 // pred_region
      %s2420 = ssub.s32 256, 256
      %2421 = vsyncadd [#allocation4], %s2420
      %s2422 = sshll.u32 [#allocation10], 4
      %s2423 = int_to_ptr.vmem [resolvable:$true] %s2422
      %2428 = dma.vmem_to_hbm [thread:$0]  %s2423, 256, %s9, [#allocation4], 128, 128, 8
    $region57: #{tpu_custom_call.1} parent=1 // pred_fallthru
      _
    // Predicated region
    $region58: #{tpu_custom_call.1} parent=1 // pred_check
      _
    $region59: #{tpu_custom_call.1} parent=1 // pred_check_branch
      %2430 = sbr.rel (0) target = $region61
    $region60: #{tpu_custom_call.1} parent=1 // pred_region
      %2431 = dma.done [#allocation4], 256
    $region61: #{tpu_custom_call.1} parent=1 // pred_fallthru
      _
    %2432 = vsyncpa [#allocation3], 1
    %2433 = vsyncpa [#allocation6], 1
    %2434 = vsyncpa [#allocation9], 1
    %2435 = vsyncpa [#allocation4], 1

</llo_original>
